<compile_context>
chip_gen: v7x
topology: tpu7x:2x2x1
jax: 0.10.0
libtpu: 0.0.40
codegen_flags: <defaults>
</compile_context>

<pallas_src>
import functools

import jax
import jax.numpy as jnp
from jax import lax
from jax.experimental import pallas as pl
from jax.experimental.pallas import tpu as pltpu

DEFAULT_TILE_BT = 512   # row tile; rows (B*T) live on the 128-lane axis everywhere
LANE = 128


def _pick_tile(bt, desired=DEFAULT_TILE_BT):
    """Largest 128-multiple tile <= desired, keeping >= 2 grid steps when possible
    so the row grid can still split across v7x's two TensorCores."""
    bt128 = ((bt + LANE - 1) // LANE) * LANE
    tile = min(desired, bt128)
    if bt128 >= 2 * LANE:
        tile = min(tile, max(LANE, (bt128 // 2) // LANE * LANE))
    return tile


def _pad_cols(a, multiple):
    pad = (-a.shape[-1]) % multiple
    if pad:
        widths = [(0, 0)] * (a.ndim - 1) + [(0, pad)]
        a = jnp.pad(a, widths)
    return a


# ----------------------------------------------------------------------------
# Pallas kernels
# ----------------------------------------------------------------------------
def encode_rvq_kernel(frames_t_ref, w_enc_t_ref, cbs_ref, cbs_t_ref, cnorm_ref,
                      idx_ref, *, card_step, num_virtual_steps):
    """Encoder projection + residual VQ + fused extend_cardinality.
    Every intermediate is lane-dense with the Bt rows on the 128-lane axis.

    frames_t_ref : [F, Tb]   bf16 framed audio, transposed (streams per tile)
    w_enc_t_ref  : [D, F]    bf16 encoder weight, transposed (resident)
    cbs_ref      : [K, N, D] bf16 codebooks (resident)            - distances
    cbs_t_ref    : [K, D, N] bf16 codebooks transposed (resident) - lookups
    cnorm_ref    : [K, N, 1] f32 precomputed ||codeword||^2
    idx_ref      : [K, Tb]   i32 selected code per (codebook, row), lane-dense,
                             already offset by card_step * (k % num_virtual_steps)
    """
    K, N, _ = cbs_ref.shape
    Tb = frames_t_ref.shape[1]

    # emb^T = Wenc^T @ frames^T : rows stay on lanes, no layout changes anywhere.
    residual = jnp.dot(w_enc_t_ref[...], frames_t_ref[...],
                       preferred_element_type=jnp.float32)          # [D, Tb] f32

    iota_n = lax.broadcasted_iota(jnp.int32, (N, Tb), 0)
    rows = []
    for k in range(K):                                               # K small & static
        cb = cbs_ref[k]                                              # [N, D] bf16
        # argmin_n ||c_n - r||^2 == argmin_n (||c_n||^2 - 2 c_n . r)
        dots = jnp.dot(cb, residual.astype(cb.dtype),
                       preferred_element_type=jnp.float32)           # [N, Tb]
        dists = cnorm_ref[k] - 2.0 * dots                            # [N,1] bcast
        min_d = jnp.min(dists, axis=0, keepdims=True)                # [1, Tb]
        # deterministic first-argmin (f32 compare; distance math stays f32)
        idx = jnp.min(jnp.where(dists == min_d, iota_n, N),
                      axis=0, keepdims=True)                         # [1, Tb] i32
        # fused extend_cardinality: codebook k belongs to virtual step k % V
        rows.append(idx + jnp.int32(card_step * (k % num_virtual_steps)))
        if k < K - 1:   # residual after the last codebook is never read
            onehot = (iota_n == idx).astype(jnp.bfloat16)            # [N, Tb]
            chosen = jnp.dot(cbs_t_ref[k], onehot,
                             preferred_element_type=jnp.float32)     # [D, Tb]
            residual = residual - chosen
    idx_ref[...] = jnp.concatenate(rows, axis=0)                     # one [K, Tb] store


def decode_kernel(codes_ref, wlut_t_ref, out_t_ref, *, num_codebooks, cardinality):
    """Modulo remap + fused one-hot lookup + decoder projection, lane-dense on Tb.

    codes_ref  : [K, Tb]   i32 (possibly >= cardinality: extend_cardinality)
    wlut_t_ref : [F, K*N]  bf16 fused (codebooks_flat @ w_dec)^T (resident)
    out_t_ref  : [F, Tb]   f32 decoded frames, transposed
    """
    K, N = num_codebooks, cardinality
    Tb = codes_ref.shape[1]
    # codes produced by this encode path are non-negative -> rem == mod
    codes = lax.rem(codes_ref[...], jnp.int32(N))                    # [K, Tb]

    # lane-dense [K*N, Tb] one-hot against a single iota; K is tiny & static
    iota_kn = lax.broadcasted_iota(jnp.int32, (K * N, Tb), 0)
    onehot = jnp.zeros((K * N, Tb), jnp.bfloat16)
    for k in range(K):
        target = codes[k:k + 1, :] + jnp.int32(k * N)                # [1, Tb]
        onehot = onehot + (iota_kn == target).astype(jnp.bfloat16)

    # single fused MXU pass: out^T = (cb_flat @ Wdec)^T @ onehot
    out_t_ref[...] = jnp.dot(wlut_t_ref[...], onehot,
                             preferred_element_type=jnp.float32
                             ).astype(out_t_ref.dtype)


# ----------------------------------------------------------------------------
# pallas_call wrappers (row-tiled grid, resident weights, lane-dense I/O)
# ----------------------------------------------------------------------------
def rvq_encode_call(frames, w_enc, codebooks, *, card_step, num_virtual_steps,
                    tile_bt=None):
    Bt, F = frames.shape
    K, N, D = codebooks.shape
    tile_bt = tile_bt or _pick_tile(Bt)

    cbs_b = codebooks.astype(jnp.bfloat16)                           # [K, N, D]
    cbs_t_b = jnp.transpose(cbs_b, (0, 2, 1))                        # [K, D, N]
    # norms of the bf16-cast codebooks so distances match the MXU operands
    c_norms = jnp.sum(cbs_b.astype(jnp.float32) ** 2, axis=-1)[..., None]   # [K,N,1]
    w_enc_t_b = w_enc.T.astype(jnp.bfloat16)                         # [D, F]
    frames_t_b = _pad_cols(frames.T.astype(jnp.bfloat16), tile_bt)   # [F, Bt_pad]
    Bt_pad = frames_t_b.shape[1]
    grid = (Bt_pad // tile_bt,)

    kernel = functools.partial(encode_rvq_kernel, card_step=card_step,
                               num_virtual_steps=num_virtual_steps)
    flops = Bt_pad * (2 * F * D + (2 * K - 1) * 2 * N * D)
    bytes_accessed = (frames_t_b.size * 2 + w_enc_t_b.size * 2 + 2 * cbs_b.size * 2
                      + c_norms.size * 4 + K * Bt_pad * 4)

    idx = pl.pallas_call(
        kernel,
        out_shape=jax.ShapeDtypeStruct((K, Bt_pad), jnp.int32),
        grid_spec=pltpu.PrefetchScalarGridSpec(
            num_scalar_prefetch=0,
            grid=grid,
            in_specs=[
                pl.BlockSpec((F, tile_bt), lambda i: (0, i)),        # streaming rows
                pl.BlockSpec((D, F), lambda i: (0, 0)),              # resident
                pl.BlockSpec((K, N, D), lambda i: (0, 0, 0)),        # resident
                pl.BlockSpec((K, D, N), lambda i: (0, 0, 0)),        # resident
                pl.BlockSpec((K, N, 1), lambda i: (0, 0, 0)),        # resident
            ],
            out_specs=pl.BlockSpec((K, tile_bt), lambda i: (0, i)),  # lane-dense
        ),
        compiler_params=pltpu.CompilerParams(
            dimension_semantics=("parallel",),
            vmem_limit_bytes=32 * 1024 * 1024),
        cost_estimate=pl.CostEstimate(flops=flops, transcendentals=0,
                                      bytes_accessed=bytes_accessed),
    )(frames_t_b, w_enc_t_b, cbs_b, cbs_t_b, c_norms)
    return idx[:, :Bt]                                               # [K, Bt]


def decode_call(codes_kt, codebooks, w_dec, *, tile_bt=None):
    """codes_kt: [K, Bt] int32 (producer layout from encode)."""
    K, Bt = codes_kt.shape
    _, N, D = codebooks.shape
    F = w_dec.shape[1]
    tile_bt = tile_bt or _pick_tile(Bt)

    # fused lookup+projection table: a single MXU pass per tile in the kernel
    w_lut_t = (codebooks.reshape(K * N, D) @ w_dec).T.astype(jnp.bfloat16)  # [F, K*N]
    codes_p = _pad_cols(codes_kt.astype(jnp.int32), tile_bt)                # [K, Bt_pad]
    Bt_pad = codes_p.shape[1]
    grid = (Bt_pad // tile_bt,)

    kernel = functools.partial(decode_kernel, num_codebooks=K, cardinality=N)
    flops = Bt_pad * 2 * K * N * F
    bytes_accessed = codes_p.size * 4 + w_lut_t.size * 2 + Bt_pad * F * 4

    out_t = pl.pallas_call(
        kernel,
        out_shape=jax.ShapeDtypeStruct((F, Bt_pad), jnp.float32),
        grid_spec=pltpu.PrefetchScalarGridSpec(
            num_scalar_prefetch=0,
            grid=grid,
            in_specs=[
                pl.BlockSpec((K, tile_bt), lambda i: (0, i)),        # streaming codes
                pl.BlockSpec((F, K * N), lambda i: (0, 0)),          # resident
            ],
            out_specs=pl.BlockSpec((F, tile_bt), lambda i: (0, i)),  # lane-dense out
        ),
        compiler_params=pltpu.CompilerParams(
            dimension_semantics=("parallel",),
            vmem_limit_bytes=32 * 1024 * 1024),
        cost_estimate=pl.CostEstimate(flops=flops, transcendentals=0,
                                      bytes_accessed=bytes_accessed),
    )(codes_p, w_lut_t)
    return out_t[:, :Bt].T                                           # [Bt, F]


# ----------------------------------------------------------------------------
# Synthetic inner CompressionModel (encode / decode)
# ----------------------------------------------------------------------------
def _frame(x, hop):
    B, C, L = x.shape
    T = L // hop
    return x.reshape(B, C, T, hop).transpose(0, 2, 1, 3).reshape(B * T, C * hop)


def inner_encode(x, w_enc, codebooks, hop):
    """model.encode: framed linear encoder + RVQ -> indices [B, K, T], scales=None."""
    B, C, L = x.shape
    T = L // hop
    K = codebooks.shape[0]
    frames = _frame(x, hop)
    idx = rvq_encode_call(frames, w_enc, codebooks,
                          card_step=0, num_virtual_steps=1)          # [K, B*T]
    indices = idx.reshape(K, B, T).transpose(1, 0, 2)                # [B, K, T]
    return indices, None


def inner_decode(codes, scale, codebooks, w_dec, channels, hop):
    """model.decode: codebook lookup + framed linear decoder -> audio [B, C, L]."""
    del scale
    B, K, T = codes.shape
    codes_kt = codes.transpose(1, 0, 2).reshape(K, B * T)            # [K, Bt]
    frames_hat = decode_call(codes_kt, codebooks, w_dec)             # [Bt, F]
    y = frames_hat.reshape(B, T, channels, hop).transpose(0, 2, 1, 3)
    return y.reshape(B, channels, T * hop)


# ----------------------------------------------------------------------------
# FlattenedCompressionModel.encode / .decode
# ----------------------------------------------------------------------------
def flattened_encode(x, w_enc, codebooks, hop, codebooks_per_step,
                     extend_cardinality=True):
    B, C, L = x.shape
    T = L // hop
    K, N, _ = codebooks.shape
    S = codebooks_per_step
    assert K % S == 0
    V = K // S

    frames = _frame(x, hop)
    # extend_cardinality fused into the encode kernel: code_k += N * (k % V)
    card_step = N if extend_cardinality else 0
    idx = rvq_encode_call(frames, w_enc, codebooks,
                          card_step=card_step, num_virtual_steps=V)   # [K, B*T]
    indices = idx.reshape(K, B, T).transpose(1, 0, 2)                 # [B, K, T]
    # rearrange 'b (k v) t -> b k (t v)'
    flat = indices.reshape(B, S, V, T).transpose(0, 1, 3, 2).reshape(B, S, T * V)
    return flat, None                                                 # scales = None


def flattened_decode(codes, scale, codebooks, w_dec, hop, codebooks_per_step,
                     channels):
    B, S, Tp = codes.shape
    K = codebooks.shape[0]
    V = K // S
    assert Tp % V == 0
    T = Tp // V
    # rearrange 'b k (t v) -> b (k v) t'; modulo by cardinality is done in-kernel
    codes3 = codes.reshape(B, S, T, V).transpose(0, 1, 3, 2).reshape(B, K, T)
    return inner_decode(codes3, scale, codebooks, w_dec, channels, hop)


# TODO(synk): FlattenedCompressionModel.forward() raises NotImplementedError in the
# reference; only encode/decode are implemented (as in the original module).

# ----------------------------------------------------------------------------
if __name__ == "__main__":
    B, C, L, hop = 2, 2, 2048, 8      # audio [B, C, L]; T = L // hop = 256 frames
    D, N = 32, 16                     # embedding dim, per-codebook cardinality
    K, S = 4, 2                       # total codebooks, codebooks_per_step
    V = K // S                        # num_virtual_steps
    T = L // hop
    F = C * hop

    key = jax.random.PRNGKey(0)
    k1, k2, k3, k4 = jax.random.split(key, 4)
    x = jax.random.normal(k1, (B, C, L), jnp.float32)
    w_enc = 0.5 * jax.random.normal(k2, (F, D), jnp.float32)
    w_dec = 0.5 * jax.random.normal(k3, (D, F), jnp.float32)
    codebooks = jax.random.normal(k4, (K, N, D), jnp.float32)

    # --- encode (flattened, extend_cardinality fused in-kernel) ---
    flat_codes, scales = flattened_encode(x, w_enc, codebooks, hop, S,
                                          extend_cardinality=True)
    flat_codes = jax.block_until_ready(flat_codes)
    assert flat_codes.shape == (B, S, T * V)
    assert flat_codes.dtype == jnp.int32

    # reference check of the flattening / extend_cardinality semantics against
    # the raw (un-extended) inner codes
    indices, _ = inner_encode(x, w_enc, codebooks, hop)              # [B, K, T]
    idx4_ref = indices.reshape(B, S, V, T).transpose(0, 1, 3, 2)     # [B, S, T, V]
    offs = (jnp.arange(V, dtype=jnp.int32) * N)[None, None, None, :]
    flat_ref = (idx4_ref + offs).reshape(B, S, T * V)
    assert jnp.array_equal(flat_codes, flat_ref), "flattening mismatch"
    # extended cardinality range check
    assert int(jnp.max(flat_codes)) < N * V and int(jnp.min(flat_codes)) >= 0

    # --- decode (flattened) ---
    y = flattened_decode(flat_codes, scales, codebooks, w_dec, hop, S, C)
    y = jax.block_until_ready(y)
    assert y.shape == x.shape and y.dtype == jnp.float32

    # decode of the flattened codes must equal decode of the raw inner codes
    y_direct = jax.block_until_ready(
        inner_decode(indices, None, codebooks, w_dec, C, hop))
    assert jnp.allclose(y, y_direct, atol=1e-5), "modulo remap mismatch"

    print("KERNEL_OK")
</pallas_src>

<mosaic_0001>
module attributes {stable_mosaic.version = 11 : i64} {
  func.func @encode_rvq_kernel(%arg0: i32, %arg1: memref<16x256xbf16, #tpu.memory_space<vmem>>, %arg2: memref<32x16xbf16, #tpu.memory_space<vmem>>, %arg3: memref<4x16x32xbf16, #tpu.memory_space<vmem>>, %arg4: memref<4x32x16xbf16, #tpu.memory_space<vmem>>, %arg5: memref<4x16x1xf32, #tpu.memory_space<vmem>>, %arg6: memref<4x256xi32, #tpu.memory_space<vmem>>) attributes {dimension_semantics = [#tpu.dimension_semantics<parallel>], iteration_bounds = array<i64: 2>, scalar_prefetch = 0 : i64, scratch_operands = 0 : i64, tpu.core_type = #tpu.core_type<tc>, window_params = [{transform_indices = @transform_0, window_bounds = array<i64: 16, 256>}, {pipeline_mode = #tpu.pipeline_mode<synchronous>, transform_indices = @transform_1, window_bounds = array<i64: 32, 16>}, {pipeline_mode = #tpu.pipeline_mode<synchronous>, transform_indices = @transform_2, window_bounds = array<i64: 4, 16, 32>}, {pipeline_mode = #tpu.pipeline_mode<synchronous>, transform_indices = @transform_3, window_bounds = array<i64: 4, 32, 16>}, {pipeline_mode = #tpu.pipeline_mode<synchronous>, transform_indices = @transform_4, window_bounds = array<i64: 4, 16, 1>}, {transform_indices = @transform_5, window_bounds = array<i64: 4, 256>}]} {
    %c0 = arith.constant 0 : index
    %c0_0 = arith.constant 0 : index
    %0 = vector.load %arg2[%c0, %c0_0] : memref<32x16xbf16, #tpu.memory_space<vmem>>, vector<32x16xbf16>
    %c0_1 = arith.constant 0 : index
    %c0_2 = arith.constant 0 : index
    %1 = vector.load %arg1[%c0_1, %c0_2] : memref<16x256xbf16, #tpu.memory_space<vmem>>, vector<16x256xbf16>
    %cst = arith.constant dense<0.000000e+00> : vector<32x256xf32>
    %2 = tpu.matmul %0, %1, %cst {dimension_numbers = #tpu.dot_dimension_numbers<[1], [0], [0], [1], [0, 0, 1, 1], [], []>} : vector<32x16xbf16>, vector<16x256xbf16>, vector<32x256xf32> -> vector<32x256xf32>
    %3 = tpu.iota {dimensions = array<i32: 0>} : vector<16x256xi32>
    %c0_3 = arith.constant 0 : index
    %c0_4 = arith.constant 0 : index
    %c0_5 = arith.constant 0 : index
    %4 = vector.load %arg3[%c0_3, %c0_4, %c0_5] : memref<4x16x32xbf16, #tpu.memory_space<vmem>>, vector<1x16x32xbf16>
    %5 = vector.shape_cast %4 : vector<1x16x32xbf16> to vector<16x32xbf16>
    %6 = arith.truncf %2 : vector<32x256xf32> to vector<32x256xbf16>
    %cst_6 = arith.constant dense<0.000000e+00> : vector<16x256xf32>
    %7 = tpu.matmul %5, %6, %cst_6 {dimension_numbers = #tpu.dot_dimension_numbers<[1], [0], [0], [1], [0, 0, 1, 1], [], []>} : vector<16x32xbf16>, vector<32x256xbf16>, vector<16x256xf32> -> vector<16x256xf32>
    %c0_7 = arith.constant 0 : index
    %c0_8 = arith.constant 0 : index
    %c0_9 = arith.constant 0 : index
    %8 = vector.load %arg5[%c0_7, %c0_8, %c0_9] : memref<4x16x1xf32, #tpu.memory_space<vmem>>, vector<1x16x1xf32>
    %9 = vector.shape_cast %8 : vector<1x16x1xf32> to vector<16x1xf32>
    %cst_10 = arith.constant 2.000000e+00 : f32
    %10 = vector.broadcast %cst_10 : f32 to vector<16x256xf32>
    %11 = arith.mulf %10, %7 : vector<16x256xf32>
    %12 = vector.broadcast %9 : vector<16x1xf32> to vector<16x256xf32>
    %13 = arith.subf %12, %11 : vector<16x256xf32>
    %cst_11 = arith.constant dense<0x7F800000> : vector<256xf32>
    %14 = vector.multi_reduction <minimumf>, %13, %cst_11 [0] : vector<16x256xf32> to vector<256xf32>
    %15 = vector.shape_cast %14 : vector<256xf32> to vector<1x256xf32>
    %16 = vector.broadcast %15 : vector<1x256xf32> to vector<16x256xf32>
    %17 = arith.cmpf oeq, %13, %16 : vector<16x256xf32>
    %c16_i32 = arith.constant 16 : i32
    %18 = vector.broadcast %c16_i32 : i32 to vector<16x256xi32>
    %19 = arith.select %17, %3, %18 : vector<16x256xi1>, vector<16x256xi32>
    %cst_12 = arith.constant dense<2147483647> : vector<256xi32>
    %20 = vector.multi_reduction <minsi>, %19, %cst_12 [0] : vector<16x256xi32> to vector<256xi32>
    %21 = vector.shape_cast %20 : vector<256xi32> to vector<1x256xi32>
    %c0_i32 = arith.constant 0 : i32
    %22 = vector.broadcast %c0_i32 : i32 to vector<1x256xi32>
    %23 = arith.addi %21, %22 : vector<1x256xi32>
    %24 = vector.broadcast %21 : vector<1x256xi32> to vector<16x256xi32>
    %25 = arith.cmpi eq, %3, %24 : vector<16x256xi32>
    %26 = arith.extui %25 : vector<16x256xi1> to vector<16x256xi32>
    %27 = arith.sitofp %26 : vector<16x256xi32> to vector<16x256xf32>
    %28 = arith.truncf %27 : vector<16x256xf32> to vector<16x256xbf16>
    %c0_13 = arith.constant 0 : index
    %c0_14 = arith.constant 0 : index
    %c0_15 = arith.constant 0 : index
    %29 = vector.load %arg4[%c0_13, %c0_14, %c0_15] : memref<4x32x16xbf16, #tpu.memory_space<vmem>>, vector<1x32x16xbf16>
    %30 = vector.shape_cast %29 : vector<1x32x16xbf16> to vector<32x16xbf16>
    %cst_16 = arith.constant dense<0.000000e+00> : vector<32x256xf32>
    %31 = tpu.matmul %30, %28, %cst_16 {dimension_numbers = #tpu.dot_dimension_numbers<[1], [0], [0], [1], [0, 0, 1, 1], [], []>} : vector<32x16xbf16>, vector<16x256xbf16>, vector<32x256xf32> -> vector<32x256xf32>
    %32 = arith.subf %2, %31 : vector<32x256xf32>
    %c1 = arith.constant 1 : index
    %c0_17 = arith.constant 0 : index
    %c0_18 = arith.constant 0 : index
    %33 = vector.load %arg3[%c1, %c0_17, %c0_18] : memref<4x16x32xbf16, #tpu.memory_space<vmem>>, vector<1x16x32xbf16>
    %34 = vector.shape_cast %33 : vector<1x16x32xbf16> to vector<16x32xbf16>
    %35 = arith.truncf %32 : vector<32x256xf32> to vector<32x256xbf16>
    %cst_19 = arith.constant dense<0.000000e+00> : vector<16x256xf32>
    %36 = tpu.matmul %34, %35, %cst_19 {dimension_numbers = #tpu.dot_dimension_numbers<[1], [0], [0], [1], [0, 0, 1, 1], [], []>} : vector<16x32xbf16>, vector<32x256xbf16>, vector<16x256xf32> -> vector<16x256xf32>
    %c1_20 = arith.constant 1 : index
    %c0_21 = arith.constant 0 : index
    %c0_22 = arith.constant 0 : index
    %37 = vector.load %arg5[%c1_20, %c0_21, %c0_22] : memref<4x16x1xf32, #tpu.memory_space<vmem>>, vector<1x16x1xf32>
    %38 = vector.shape_cast %37 : vector<1x16x1xf32> to vector<16x1xf32>
    %cst_23 = arith.constant 2.000000e+00 : f32
    %39 = vector.broadcast %cst_23 : f32 to vector<16x256xf32>
    %40 = arith.mulf %39, %36 : vector<16x256xf32>
    %41 = vector.broadcast %38 : vector<16x1xf32> to vector<16x256xf32>
    %42 = arith.subf %41, %40 : vector<16x256xf32>
    %cst_24 = arith.constant dense<0x7F800000> : vector<256xf32>
    %43 = vector.multi_reduction <minimumf>, %42, %cst_24 [0] : vector<16x256xf32> to vector<256xf32>
    %44 = vector.shape_cast %43 : vector<256xf32> to vector<1x256xf32>
    %45 = vector.broadcast %44 : vector<1x256xf32> to vector<16x256xf32>
    %46 = arith.cmpf oeq, %42, %45 : vector<16x256xf32>
    %c16_i32_25 = arith.constant 16 : i32
    %47 = vector.broadcast %c16_i32_25 : i32 to vector<16x256xi32>
    %48 = arith.select %46, %3, %47 : vector<16x256xi1>, vector<16x256xi32>
    %cst_26 = arith.constant dense<2147483647> : vector<256xi32>
    %49 = vector.multi_reduction <minsi>, %48, %cst_26 [0] : vector<16x256xi32> to vector<256xi32>
    %50 = vector.shape_cast %49 : vector<256xi32> to vector<1x256xi32>
    %c16_i32_27 = arith.constant 16 : i32
    %51 = vector.broadcast %c16_i32_27 : i32 to vector<1x256xi32>
    %52 = arith.addi %50, %51 : vector<1x256xi32>
    %53 = vector.broadcast %50 : vector<1x256xi32> to vector<16x256xi32>
    %54 = arith.cmpi eq, %3, %53 : vector<16x256xi32>
    %55 = arith.extui %54 : vector<16x256xi1> to vector<16x256xi32>
    %56 = arith.sitofp %55 : vector<16x256xi32> to vector<16x256xf32>
    %57 = arith.truncf %56 : vector<16x256xf32> to vector<16x256xbf16>
    %c1_28 = arith.constant 1 : index
    %c0_29 = arith.constant 0 : index
    %c0_30 = arith.constant 0 : index
    %58 = vector.load %arg4[%c1_28, %c0_29, %c0_30] : memref<4x32x16xbf16, #tpu.memory_space<vmem>>, vector<1x32x16xbf16>
    %59 = vector.shape_cast %58 : vector<1x32x16xbf16> to vector<32x16xbf16>
    %cst_31 = arith.constant dense<0.000000e+00> : vector<32x256xf32>
    %60 = tpu.matmul %59, %57, %cst_31 {dimension_numbers = #tpu.dot_dimension_numbers<[1], [0], [0], [1], [0, 0, 1, 1], [], []>} : vector<32x16xbf16>, vector<16x256xbf16>, vector<32x256xf32> -> vector<32x256xf32>
    %61 = arith.subf %32, %60 : vector<32x256xf32>
    %c2 = arith.constant 2 : index
    %c0_32 = arith.constant 0 : index
    %c0_33 = arith.constant 0 : index
    %62 = vector.load %arg3[%c2, %c0_32, %c0_33] : memref<4x16x32xbf16, #tpu.memory_space<vmem>>, vector<1x16x32xbf16>
    %63 = vector.shape_cast %62 : vector<1x16x32xbf16> to vector<16x32xbf16>
    %64 = arith.truncf %61 : vector<32x256xf32> to vector<32x256xbf16>
    %cst_34 = arith.constant dense<0.000000e+00> : vector<16x256xf32>
    %65 = tpu.matmul %63, %64, %cst_34 {dimension_numbers = #tpu.dot_dimension_numbers<[1], [0], [0], [1], [0, 0, 1, 1], [], []>} : vector<16x32xbf16>, vector<32x256xbf16>, vector<16x256xf32> -> vector<16x256xf32>
    %c2_35 = arith.constant 2 : index
    %c0_36 = arith.constant 0 : index
    %c0_37 = arith.constant 0 : index
    %66 = vector.load %arg5[%c2_35, %c0_36, %c0_37] : memref<4x16x1xf32, #tpu.memory_space<vmem>>, vector<1x16x1xf32>
    %67 = vector.shape_cast %66 : vector<1x16x1xf32> to vector<16x1xf32>
    %cst_38 = arith.constant 2.000000e+00 : f32
    %68 = vector.broadcast %cst_38 : f32 to vector<16x256xf32>
    %69 = arith.mulf %68, %65 : vector<16x256xf32>
    %70 = vector.broadcast %67 : vector<16x1xf32> to vector<16x256xf32>
    %71 = arith.subf %70, %69 : vector<16x256xf32>
    %cst_39 = arith.constant dense<0x7F800000> : vector<256xf32>
    %72 = vector.multi_reduction <minimumf>, %71, %cst_39 [0] : vector<16x256xf32> to vector<256xf32>
    %73 = vector.shape_cast %72 : vector<256xf32> to vector<1x256xf32>
    %74 = vector.broadcast %73 : vector<1x256xf32> to vector<16x256xf32>
    %75 = arith.cmpf oeq, %71, %74 : vector<16x256xf32>
    %c16_i32_40 = arith.constant 16 : i32
    %76 = vector.broadcast %c16_i32_40 : i32 to vector<16x256xi32>
    %77 = arith.select %75, %3, %76 : vector<16x256xi1>, vector<16x256xi32>
    %cst_41 = arith.constant dense<2147483647> : vector<256xi32>
    %78 = vector.multi_reduction <minsi>, %77, %cst_41 [0] : vector<16x256xi32> to vector<256xi32>
    %79 = vector.shape_cast %78 : vector<256xi32> to vector<1x256xi32>
    %c0_i32_42 = arith.constant 0 : i32
    %80 = vector.broadcast %c0_i32_42 : i32 to vector<1x256xi32>
    %81 = arith.addi %79, %80 : vector<1x256xi32>
    %82 = vector.broadcast %79 : vector<1x256xi32> to vector<16x256xi32>
    %83 = arith.cmpi eq, %3, %82 : vector<16x256xi32>
    %84 = arith.extui %83 : vector<16x256xi1> to vector<16x256xi32>
    %85 = arith.sitofp %84 : vector<16x256xi32> to vector<16x256xf32>
    %86 = arith.truncf %85 : vector<16x256xf32> to vector<16x256xbf16>
    %c2_43 = arith.constant 2 : index
    %c0_44 = arith.constant 0 : index
    %c0_45 = arith.constant 0 : index
    %87 = vector.load %arg4[%c2_43, %c0_44, %c0_45] : memref<4x32x16xbf16, #tpu.memory_space<vmem>>, vector<1x32x16xbf16>
    %88 = vector.shape_cast %87 : vector<1x32x16xbf16> to vector<32x16xbf16>
    %cst_46 = arith.constant dense<0.000000e+00> : vector<32x256xf32>
    %89 = tpu.matmul %88, %86, %cst_46 {dimension_numbers = #tpu.dot_dimension_numbers<[1], [0], [0], [1], [0, 0, 1, 1], [], []>} : vector<32x16xbf16>, vector<16x256xbf16>, vector<32x256xf32> -> vector<32x256xf32>
    %90 = arith.subf %61, %89 : vector<32x256xf32>
    %c3 = arith.constant 3 : index
    %c0_47 = arith.constant 0 : index
    %c0_48 = arith.constant 0 : index
    %91 = vector.load %arg3[%c3, %c0_47, %c0_48] : memref<4x16x32xbf16, #tpu.memory_space<vmem>>, vector<1x16x32xbf16>
    %92 = vector.shape_cast %91 : vector<1x16x32xbf16> to vector<16x32xbf16>
    %93 = arith.truncf %90 : vector<32x256xf32> to vector<32x256xbf16>
    %cst_49 = arith.constant dense<0.000000e+00> : vector<16x256xf32>
    %94 = tpu.matmul %92, %93, %cst_49 {dimension_numbers = #tpu.dot_dimension_numbers<[1], [0], [0], [1], [0, 0, 1, 1], [], []>} : vector<16x32xbf16>, vector<32x256xbf16>, vector<16x256xf32> -> vector<16x256xf32>
    %c3_50 = arith.constant 3 : index
    %c0_51 = arith.constant 0 : index
    %c0_52 = arith.constant 0 : index
    %95 = vector.load %arg5[%c3_50, %c0_51, %c0_52] : memref<4x16x1xf32, #tpu.memory_space<vmem>>, vector<1x16x1xf32>
    %96 = vector.shape_cast %95 : vector<1x16x1xf32> to vector<16x1xf32>
    %cst_53 = arith.constant 2.000000e+00 : f32
    %97 = vector.broadcast %cst_53 : f32 to vector<16x256xf32>
    %98 = arith.mulf %97, %94 : vector<16x256xf32>
    %99 = vector.broadcast %96 : vector<16x1xf32> to vector<16x256xf32>
    %100 = arith.subf %99, %98 : vector<16x256xf32>
    %cst_54 = arith.constant dense<0x7F800000> : vector<256xf32>
    %101 = vector.multi_reduction <minimumf>, %100, %cst_54 [0] : vector<16x256xf32> to vector<256xf32>
    %102 = vector.shape_cast %101 : vector<256xf32> to vector<1x256xf32>
    %103 = vector.broadcast %102 : vector<1x256xf32> to vector<16x256xf32>
    %104 = arith.cmpf oeq, %100, %103 : vector<16x256xf32>
    %c16_i32_55 = arith.constant 16 : i32
    %105 = vector.broadcast %c16_i32_55 : i32 to vector<16x256xi32>
    %106 = arith.select %104, %3, %105 : vector<16x256xi1>, vector<16x256xi32>
    %cst_56 = arith.constant dense<2147483647> : vector<256xi32>
    %107 = vector.multi_reduction <minsi>, %106, %cst_56 [0] : vector<16x256xi32> to vector<256xi32>
    %108 = vector.shape_cast %107 : vector<256xi32> to vector<1x256xi32>
    %c16_i32_57 = arith.constant 16 : i32
    %109 = vector.broadcast %c16_i32_57 : i32 to vector<1x256xi32>
    %110 = arith.addi %108, %109 : vector<1x256xi32>
    %111 = tpu.concatenate %23, %52, %81, %110 in 0 : vector<1x256xi32>, vector<1x256xi32>, vector<1x256xi32>, vector<1x256xi32> -> vector<4x256xi32>
    %c0_58 = arith.constant 0 : index
    %c0_59 = arith.constant 0 : index
    %112 = vector.load %arg6[%c0_58, %c0_59] : memref<4x256xi32, #tpu.memory_space<vmem>>, vector<4x256xi32>
    tpu.vector_store %arg6[%c0_58, %c0_59], %111 {strides = array<i32>} : memref<4x256xi32, #tpu.memory_space<vmem>>, vector<4x256xi32>,
    return
  }
  func.func @transform_0(%arg0: i32) -> (i32, i32) {
    %c0_i32 = arith.constant 0 : i32
    %c0_i32_0 = arith.constant 0 : i32
    return %c0_i32, %arg0 : i32, i32
  }
  func.func @transform_1(%arg0: i32) -> (i32, i32) {
    %c0_i32 = arith.constant 0 : i32
    %c0_i32_0 = arith.constant 0 : i32
    %c0_i32_1 = arith.constant 0 : i32
    return %c0_i32, %c0_i32_0 : i32, i32
  }
  func.func @transform_2(%arg0: i32) -> (i32, i32, i32) {
    %c0_i32 = arith.constant 0 : i32
    %c0_i32_0 = arith.constant 0 : i32
    %c0_i32_1 = arith.constant 0 : i32
    %c0_i32_2 = arith.constant 0 : i32
    return %c0_i32, %c0_i32_0, %c0_i32_1 : i32, i32, i32
  }
  func.func @transform_3(%arg0: i32) -> (i32, i32, i32) {
    %c0_i32 = arith.constant 0 : i32
    %c0_i32_0 = arith.constant 0 : i32
    %c0_i32_1 = arith.constant 0 : i32
    %c0_i32_2 = arith.constant 0 : i32
    return %c0_i32, %c0_i32_0, %c0_i32_1 : i32, i32, i32
  }
  func.func @transform_4(%arg0: i32) -> (i32, i32, i32) {
    %c0_i32 = arith.constant 0 : i32
    %c0_i32_0 = arith.constant 0 : i32
    %c0_i32_1 = arith.constant 0 : i32
    %c0_i32_2 = arith.constant 0 : i32
    return %c0_i32, %c0_i32_0, %c0_i32_1 : i32, i32, i32
  }
  func.func @transform_5(%arg0: i32) -> (i32, i32) {
    %c0_i32 = arith.constant 0 : i32
    %c0_i32_0 = arith.constant 0 : i32
    return %c0_i32, %arg0 : i32, i32
  }
}

</mosaic_0001>

<llo_original>
// kernel: tpu_custom_call.1
$region0: #{tpu_custom_call.1}
  #allocation0 [shape = 'u32[]', space=smem, size = 0x4, offset = 0x4, fixed_abs, tag = 'smem constant byte address 0x4 - core index']
  #allocation1 [shape = 'u32[144,128]{1,0:T(1,128)}', space=vmem, size = 0x12000, scoped, tag = 'internal scratch']
  %s0 = inlined_call_operand.vmem [shape: bf16[16,512], index: 0, kind: input, shape index: {}]
  %s1 = inlined_call_operand.vmem [shape: bf16[32,16], index: 1, kind: input, shape index: {}]
  %s2 = inlined_call_operand.vmem [shape: bf16[4,16,32], index: 2, kind: input, shape index: {}]
  %s3 = inlined_call_operand.vmem [shape: bf16[4,32,16], index: 3, kind: input, shape index: {}]
  %s4 = inlined_call_operand.vmem [shape: f32[4,16,1], index: 4, kind: input, shape index: {}]
  %s5 = inlined_call_operand.hbm [shape: s32[4,512], index: 5, kind: output, shape index: {}]
  %s6 = sld [smem:[#allocation0]]
  $region91: #{tpu_custom_call.1} parent=0
    _
  %s8 = ssub.s32 1, %s6
  %s9 = scalar_select 0, %s8, %s6
  $region1: #{tpu_custom_call.1} parent=0
    #allocation2 [shape = 'u8[16384]{0}', space=vmem, size = 0x4000, scoped, tag = 'input window, operand 0']
    #allocation3 [shape = 'u8[8192]{0}', space=vmem, size = 0x2000, scoped, tag = 'output window, operand 0']
    #allocation4 [shape = 's32[2]{0}', space=sflag, size = 0x8, scoped, tag = 'scoped memory for tpu_custom_call.1']
    %10 = vsyncpa [#allocation4], 0
    %s11 = scalar_lea.sflag [#allocation4], 1
    %12 = vsyncpa %s11, 0
    loop: start=0, step=1, limit=4
    $region2: #{tpu_custom_call.1} parent=1 // loop_pre_header
      _
    $region3: #{tpu_custom_call.1} parent=1 // loop_header
      %s14 = sphi 0, %s18
      %p15 = scmp.ge.s32.totalorder %s14, 4
      %s24 = sphi 0, %s26
      %s27 = sphi 0, %s24
      %s28 = sphi 0, %s27
      %s44 = sphi 0, %s28
      %s48 = sphi 0, %s48
      %s50 = sphi 0, %s48
      %s51 = sphi 0, %s50
      %s65 = sphi 0, %s51
      %s69 = sphi 0, %s69
      %s71 = sphi 0, %s69
      %s72 = sphi 0, %s71
      %s86 = sphi 0, %s72
      %s90 = sphi 0, %s90
      %s92 = sphi 0, %s90
      %s93 = sphi 0, %s92
      %s107 = sphi 0, %s93
      %s111 = sphi 0, %s111
      %s113 = sphi 0, %s111
      %s114 = sphi 0, %s113
      %s128 = sphi 0, %s114
      %s134 = sphi 0, %s136
      %s137 = sphi 0, %s134
      %s138 = sphi 0, %s137
      %s154 = sphi 0, %s138
    $region4: #{tpu_custom_call.1} parent=1 // loop_header_branch
      %17 = sbr.rel (%p15) target = $region8
    $region5: #{tpu_custom_call.1} parent=1 // loop_body
      %s19 = ssub.s32 %s14, 1
      %s20 = ssub.s32 %s14, 2
      %s21 = sadd.s32 %s14, 1
      %s22 = ssub.s32 %s14, %s21
      %p23 = scmp.eq.s32.totalorder %s22, 0
      %s25 = sadd.s32 %s24, 1
      %s26 = scalar_select %p23, %s24, %s25
      %p29 = pneg %p23
      %p30 = scmp.eq.s32.totalorder %s14, 1
      %p31 = por %p29, %p30
      %p32 = scmp.ne.s32.totalorder %s24, %s27
      %p33 = scmp.eq.s32.totalorder %s14, 0
      %p34 = por %p32, %p33
      %p35 = scmp.ne.s32.totalorder %s24, %s27
      %p36 = scmp.eq.s32.totalorder %s19, 1
      %p37 = por %p35, %p36
      %p38 = scmp.ne.s32.totalorder %s27, %s28
      %p39 = scmp.eq.s32.totalorder %s19, 0
      %p40 = por %p38, %p39
      %p41 = scmp.ne.s32.totalorder %s27, %s28
      %p42 = scmp.eq.s32.totalorder %s20, 1
      %p43 = por %p41, %p42
      %p45 = scmp.ne.s32.totalorder %s28, %s44
      %p46 = scmp.eq.s32.totalorder %s20, 0
      %p47 = por %p45, %p46
      %s49 = sadd.s32 %s48, 1
      %p52 = scmp.eq.s32.totalorder %s14, 1
      %p53 = scmp.ne.s32.totalorder %s48, %s50
      %p54 = scmp.eq.s32.totalorder %s14, 0
      %p55 = por %p53, %p54
      %p56 = scmp.ne.s32.totalorder %s48, %s50
      %p57 = scmp.eq.s32.totalorder %s19, 1
      %p58 = por %p56, %p57
      %p59 = scmp.ne.s32.totalorder %s50, %s51
      %p60 = scmp.eq.s32.totalorder %s19, 0
      %p61 = por %p59, %p60
      %p62 = scmp.ne.s32.totalorder %s50, %s51
      %p63 = scmp.eq.s32.totalorder %s20, 1
      %p64 = por %p62, %p63
      %p66 = scmp.ne.s32.totalorder %s51, %s65
      %p67 = scmp.eq.s32.totalorder %s20, 0
      %p68 = por %p66, %p67
      %s70 = sadd.s32 %s69, 1
      %p73 = scmp.eq.s32.totalorder %s14, 1
      %p74 = scmp.ne.s32.totalorder %s69, %s71
      %p75 = scmp.eq.s32.totalorder %s14, 0
      %p76 = por %p74, %p75
      %p77 = scmp.ne.s32.totalorder %s69, %s71
      %p78 = scmp.eq.s32.totalorder %s19, 1
      %p79 = por %p77, %p78
      %p80 = scmp.ne.s32.totalorder %s71, %s72
      %p81 = scmp.eq.s32.totalorder %s19, 0
      %p82 = por %p80, %p81
      %p83 = scmp.ne.s32.totalorder %s71, %s72
      %p84 = scmp.eq.s32.totalorder %s20, 1
      %p85 = por %p83, %p84
      %p87 = scmp.ne.s32.totalorder %s72, %s86
      %p88 = scmp.eq.s32.totalorder %s20, 0
      %p89 = por %p87, %p88
      %s91 = sadd.s32 %s90, 1
      %p94 = scmp.eq.s32.totalorder %s14, 1
      %p95 = scmp.ne.s32.totalorder %s90, %s92
      %p96 = scmp.eq.s32.totalorder %s14, 0
      %p97 = por %p95, %p96
      %p98 = scmp.ne.s32.totalorder %s90, %s92
      %p99 = scmp.eq.s32.totalorder %s19, 1
      %p100 = por %p98, %p99
      %p101 = scmp.ne.s32.totalorder %s92, %s93
      %p102 = scmp.eq.s32.totalorder %s19, 0
      %p103 = por %p101, %p102
      %p104 = scmp.ne.s32.totalorder %s92, %s93
      %p105 = scmp.eq.s32.totalorder %s20, 1
      %p106 = por %p104, %p105
      %p108 = scmp.ne.s32.totalorder %s93, %s107
      %p109 = scmp.eq.s32.totalorder %s20, 0
      %p110 = por %p108, %p109
      %s112 = sadd.s32 %s111, 1
      %p115 = scmp.eq.s32.totalorder %s14, 1
      %p116 = scmp.ne.s32.totalorder %s111, %s113
      %p117 = scmp.eq.s32.totalorder %s14, 0
      %p118 = por %p116, %p117
      %p119 = scmp.ne.s32.totalorder %s111, %s113
      %p120 = scmp.eq.s32.totalorder %s19, 1
      %p121 = por %p119, %p120
      %p122 = scmp.ne.s32.totalorder %s113, %s114
      %p123 = scmp.eq.s32.totalorder %s19, 0
      %p124 = por %p122, %p123
      %p125 = scmp.ne.s32.totalorder %s113, %s114
      %p126 = scmp.eq.s32.totalorder %s20, 1
      %p127 = por %p125, %p126
      %p129 = scmp.ne.s32.totalorder %s114, %s128
      %p130 = scmp.eq.s32.totalorder %s20, 0
      %p131 = por %p129, %p130
      %s132 = ssub.s32 %s14, %s21
      %p133 = scmp.eq.s32.totalorder %s132, 0
      %s135 = sadd.s32 %s134, 1
      %s136 = scalar_select %p133, %s134, %s135
      %p139 = pneg %p133
      %p140 = scmp.eq.s32.totalorder %s14, 1
      %p141 = por %p139, %p140
      %p142 = scmp.ne.s32.totalorder %s134, %s137
      %p143 = scmp.eq.s32.totalorder %s14, 0
      %p144 = por %p142, %p143
      %p145 = scmp.ne.s32.totalorder %s134, %s137
      %p146 = scmp.eq.s32.totalorder %s19, 1
      %p147 = por %p145, %p146
      %p148 = scmp.ne.s32.totalorder %s137, %s138
      %p149 = scmp.eq.s32.totalorder %s19, 0
      %p150 = por %p148, %p149
      %p151 = scmp.ne.s32.totalorder %s137, %s138
      %p152 = scmp.eq.s32.totalorder %s20, 1
      %p153 = por %p151, %p152
      %p155 = scmp.ne.s32.totalorder %s138, %s154
      %p156 = scmp.eq.s32.totalorder %s20, 0
      %p157 = por %p155, %p156
      %p158 = scmp.le.s32.totalorder 1, %s14
      %p159 = scmp.lt.s32.totalorder %s14, 3
      %p160 = pnand %p158, %p159
      %p161 = pneg %p160
      // Predicated region
      $region9: #{tpu_custom_call.1} parent=5 // pred_check
        _
      $region10: #{tpu_custom_call.1} parent=5 // pred_check_branch
        %163 = sbr.rel (%p160) target = $region12
      $region11: #{tpu_custom_call.1} parent=5 // pred_region
        %s164 = ssub.s32 %s14, 1
        // Predicated region
        $region13: #{tpu_custom_call.1} parent=11 // pred_check
          %p165 = pneg %p61
        $region14: #{tpu_custom_call.1} parent=11 // pred_check_branch
          %167 = sbr.rel (%p165) target = $region16
        $region15: #{tpu_custom_call.1} parent=11 // pred_region
          _
        $region16: #{tpu_custom_call.1} parent=11 // pred_fallthru
          _
        // Predicated region
        $region17: #{tpu_custom_call.1} parent=11 // pred_check
          %p168 = pneg %p82
        $region18: #{tpu_custom_call.1} parent=11 // pred_check_branch
          %170 = sbr.rel (%p168) target = $region20
        $region19: #{tpu_custom_call.1} parent=11 // pred_region
          _
        $region20: #{tpu_custom_call.1} parent=11 // pred_fallthru
          _
        // Predicated region
        $region21: #{tpu_custom_call.1} parent=11 // pred_check
          %p171 = pneg %p103
        $region22: #{tpu_custom_call.1} parent=11 // pred_check_branch
          %173 = sbr.rel (%p171) target = $region24
        $region23: #{tpu_custom_call.1} parent=11 // pred_region
          _
        $region24: #{tpu_custom_call.1} parent=11 // pred_fallthru
          _
        // Predicated region
        $region25: #{tpu_custom_call.1} parent=11 // pred_check
          %p174 = pneg %p124
        $region26: #{tpu_custom_call.1} parent=11 // pred_check_branch
          %176 = sbr.rel (%p174) target = $region28
        $region27: #{tpu_custom_call.1} parent=11 // pred_region
          _
        $region28: #{tpu_custom_call.1} parent=11 // pred_fallthru
          _
      $region12: #{tpu_custom_call.1} parent=5 // pred_fallthru
        _
      %p177 = scmp.lt.s32.totalorder %s14, 2
      // Predicated region
      $region29: #{tpu_custom_call.1} parent=5 // pred_check
        %p178 = pneg %p177
      $region30: #{tpu_custom_call.1} parent=5 // pred_check_branch
        %180 = sbr.rel (%p178) target = $region32
      $region31: #{tpu_custom_call.1} parent=5 // pred_region
        // Predicated region
        $region33: #{tpu_custom_call.1} parent=31 // pred_check
          %p181 = pneg %p34
        $region34: #{tpu_custom_call.1} parent=31 // pred_check_branch
          %183 = sbr.rel (%p181) target = $region36
        $region35: #{tpu_custom_call.1} parent=31 // pred_region
          %s184 = sand.u32 %s24, 1
          %s185 = sand.u32 %s24, 1
          %s186 = smul.addr %s185, 16
          %s187 = scalar_lea.vmem [#allocation2], %s186
          %s188 = smul.u32 2, %s14
          %s189 = smul.addr %s188, 4
          %s190 = scalar_lea.vmem %s0, %s189
          // Predicated region
          $region37: #{tpu_custom_call.1} parent=35 // pred_check
            _
          $region38: #{tpu_custom_call.1} parent=35 // pred_check_branch
            %192 = sbr.rel (0) target = $region40
          $region39: #{tpu_custom_call.1} parent=35 // pred_region
            // Predicated region
            $region41: #{tpu_custom_call.1} parent=39 // pred_check
              _
            $region42: #{tpu_custom_call.1} parent=39 // pred_check_branch
              %194 = sbr.rel (0) target = $region44
            $region43: #{tpu_custom_call.1} parent=39 // pred_region
              // Predicated region
              $region56: #{tpu_custom_call.1} parent=43 // pred_check
                _
              $region57: #{tpu_custom_call.1} parent=43 // pred_check_branch
                %211 = sbr.rel (0) target = $region59
              $region58: #{tpu_custom_call.1} parent=43 // pred_region
                loop: start=0, step=1, limit=1
                $region60: #{tpu_custom_call.1} parent=58 // loop_pre_header
                  _
                $region61: #{tpu_custom_call.1} parent=58 // loop_header
                  %s213 = sphi 0, %s217
                  %p214 = scmp.ge.s32.totalorder %s213, 1
                  %s218 = sphi %s190, %s190
                  %s219 = sphi %s187, %s187
                $region62: #{tpu_custom_call.1} parent=58 // loop_header_branch
                  %216 = sbr.rel (%p214) target = $region66
                $region63: #{tpu_custom_call.1} parent=58 // loop_body
                  %v220 = vld [vmem:[%s218] sm:$0xff]
                  %221 = vst [vmem:[%s219] sm:$0xff] %v220
                  %v222 = vld [vmem:[%s218 + $0x10] sm:$0xff]
                  %223 = vst [vmem:[%s219 + $0x8] sm:$0xff] %v222
                $region64: #{tpu_custom_call.1} parent=58 // loop_footer
                  %s217 = sadd.s32 1, %s213
                $region65: #{tpu_custom_call.1} parent=58 // loop_footer_branch
                  %212 = sbr.rel target = $region61
                $region66: #{tpu_custom_call.1} parent=58 // loop_exit
                  _
              $region59: #{tpu_custom_call.1} parent=43 // pred_fallthru
                _
              // Predicated region
              $region67: #{tpu_custom_call.1} parent=43 // pred_check
                _
              $region68: #{tpu_custom_call.1} parent=43 // pred_check_branch
                %225 = sbr.rel target = $region70
              $region69: #{tpu_custom_call.1} parent=43 // pred_region
                _
              $region70: #{tpu_custom_call.1} parent=43 // pred_fallthru
                _
            $region44: #{tpu_custom_call.1} parent=39 // pred_fallthru
              _
            // Predicated region
            $region45: #{tpu_custom_call.1} parent=39 // pred_check
              _
            $region46: #{tpu_custom_call.1} parent=39 // pred_check_branch
              %196 = sbr.rel target = $region48
            $region47: #{tpu_custom_call.1} parent=39 // pred_region
              loop: start=0, step=1, limit=1
              $region49: #{tpu_custom_call.1} parent=47 // loop_pre_header
                _
              $region50: #{tpu_custom_call.1} parent=47 // loop_header
                %s199 = sphi 0, %s203
                %p200 = scmp.ge.s32.totalorder %s199, 1
                %s204 = sphi %s190, %s190
                %s205 = sphi %s187, %s187
              $region51: #{tpu_custom_call.1} parent=47 // loop_header_branch
                %202 = sbr.rel (%p200) target = $region55
              $region52: #{tpu_custom_call.1} parent=47 // loop_body
                %v206 = vld [vmem:[%s204] sm:$0xff]
                %207 = vst [vmem:[%s205] sm:$0xff] %v206
                %v208 = vld [vmem:[%s204 + $0x10] sm:$0xff]
                %209 = vst [vmem:[%s205 + $0x8] sm:$0xff] %v208
              $region53: #{tpu_custom_call.1} parent=47 // loop_footer
                %s203 = sadd.s32 1, %s199
              $region54: #{tpu_custom_call.1} parent=47 // loop_footer_branch
                %198 = sbr.rel target = $region50
              $region55: #{tpu_custom_call.1} parent=47 // loop_exit
                _
            $region48: #{tpu_custom_call.1} parent=39 // pred_fallthru
              _
          $region40: #{tpu_custom_call.1} parent=35 // pred_fallthru
            _
          %226 = vnop
        $region36: #{tpu_custom_call.1} parent=31 // pred_fallthru
          _
      $region32: #{tpu_custom_call.1} parent=5 // pred_fallthru
        _
      %p227 = scmp.le.s32.totalorder 1, %s14
      %p228 = scmp.lt.s32.totalorder %s14, 3
      %p229 = pnand %p227, %p228
      %p230 = pneg %p229
      // Predicated region
      $region71: #{tpu_custom_call.1} parent=5 // pred_check
        _
      $region72: #{tpu_custom_call.1} parent=5 // pred_check_branch
        %232 = sbr.rel (%p229) target = $region74
      $region73: #{tpu_custom_call.1} parent=5 // pred_region
        %s233 = ssub.s32 %s14, 1
        %s234 = sand.u32 %s27, 1
        %s235 = sand.u32 %s27, 1
        %s236 = smul.addr %s235, 16
        %s237 = scalar_lea.vmem [#allocation2], %s236
        // Predicated region
        $region75: #{tpu_custom_call.1} parent=73 // pred_check
          %p238 = pneg %p40
        $region76: #{tpu_custom_call.1} parent=73 // pred_check_branch
          %240 = sbr.rel (%p238) target = $region78
        $region77: #{tpu_custom_call.1} parent=73 // pred_region
          _
        $region78: #{tpu_custom_call.1} parent=73 // pred_fallthru
          _
        %s241 = sand.u32 %s27, 1
        %s242 = sand.u32 %s27, 1
        %s243 = smul.addr %s242, 16
        %s244 = scalar_lea.vmem [#allocation2], %s243
        %p245 = pneg %p40
        %p246 = pneg %p37
        %p247 = pneg %p61
        %p248 = pneg %p58
        %p249 = pneg %p82
        %p250 = pneg %p79
        %p251 = pneg %p103
        %p252 = pneg %p100
        %p253 = pneg %p124
        %p254 = pneg %p121
        %p255 = pneg %p150
        %p256 = pneg %p147
        %s257 = sand.u32 %s137, 1
        %s258 = scalar_lea.sflag [#allocation4], %s257
        %s259 = sand.u32 %s137, 1
        %s260 = smul.addr %s259, 8
        %s261 = scalar_lea.vmem [#allocation3], %s260
        %s262 = smul.u32 2, %s19
        %s263 = smul.u32 2, %s19
        %v265 = vld [vmem:[%s1] sm:$0xf]
        %v266 = vld [vmem:[%s1 + $0x4] sm:$0xf]
        %v267 = vld [vmem:[%s1 + $0x8] sm:$0xf]
        %v268 = vld [vmem:[%s1 + $0xc] sm:$0xf]
        %v269 = vld [vmem:[%s237] sm:$0xff]
        %v270 = vld [vmem:[%s237 + $0x8] sm:$0xff]
        %v275 = vunpack.c.l.b16 %v265
        %v276 = vunpack.c.l.b16 %v266
        %v277 = vunpack.c.l.b16 %v267
        %v278 = vunpack.c.l.b16 %v268
        %v279 = vpack.c.b16 %v276, %v275
        %v280 = vpack.c.b16 %v278, %v277
        %v283 = vunpack.c.l.b16 %v269
        %v284 = vunpack.c.h.b16 %v269
        %v285 = vunpack.c.l.b16 %v270
        %v286 = vunpack.c.h.b16 %v270
        %v287 = vpack.c.b16 %v285, %v283
        %v288 = vpack.c.b16 %v286, %v284
        %vm291 = vcmask 130048
        %v293 = vsel %vm291, %v279, 0
        %v296 = vsel %vm291, %v280, 0
        %298 = vmatprep.subr.bf16.mxu0 %v288
        %299 = vmatpush1.bf16.msra.mxu0 %v287
        %300 = vmatprep.subr.bf16.mxu0 0
        %301 = vmatpush1.bf16.msra.mxu0 0
        %302 = vmatprep.subr.bf16.mxu0 0
        %303 = vmatpush1.bf16.msra.mxu0 0
        %304 = vmatprep.subr.bf16.mxu0 0
        %305 = vmatpush1.bf16.msra.mxu0 0
        %306 = vmatprep.subr.bf16.mxu0 0
        %307 = vmatpush1.bf16.msra.mxu0 0
        %308 = vmatprep.subr.bf16.mxu0 0
        %309 = vmatpush1.bf16.msra.mxu0 0
        %310 = vmatprep.subr.bf16.mxu0 0
        %311 = vmatpush1.bf16.msra.mxu0 0
        %312 = vmatprep.subr.bf16.mxu0 0
        %313 = vmatpush1.bf16.msra.mxu0 0
        %314 = vmatprep.subr.bf16.mxu0 0
        %315 = vmatpush1.bf16.msra.mxu0 0
        %316 = vmatprep.subr.bf16.mxu0 0
        %317 = vmatpush1.bf16.msra.mxu0 0
        %318 = vmatprep.subr.bf16.mxu0 0
        %319 = vmatpush1.bf16.msra.mxu0 0
        %320 = vmatprep.subr.bf16.mxu0 0
        %321 = vmatpush1.bf16.msra.mxu0 0
        %322 = vmatprep.subr.bf16.mxu0 0
        %323 = vmatpush1.bf16.msra.mxu0 0
        %324 = vmatprep.subr.bf16.mxu0 0
        %325 = vmatpush1.bf16.msra.mxu0 0
        %326 = vmatprep.subr.bf16.mxu0 0
        %327 = vmatpush1.bf16.msra.mxu0 0
        %328 = vmatprep.subr.bf16.mxu0 0
        %329 = vmatpush1.bf16.msra.mxu0 0
        %330 = vmatprep.mubr.bf16.mxu0 0
        %331 = vmatmul.mubr.bf16.gmra.mrb[0].mxu0 %v293
        %v332 = vpop.f32.mrb[0].mxu0
        %v333 = vadd.f32 0.0, %v332
        %v334 = vpop.f32.mrb[0].mxu0
        %v335 = vadd.f32 0.0, %v334
        %v336 = vpop.f32.mrb[0].mxu0
        %v337 = vadd.f32 0.0, %v336
        %v338 = vpop.f32.mrb[0].mxu0
        %v339 = vadd.f32 0.0, %v338
        %340 = vmatprep.mubr.bf16.mxu0 0
        %341 = vmatmul.mubr.bf16.gmra.mrb[0].mxu0 %v296
        %v342 = vpop.f32.mrb[0].mxu0
        %v343 = vadd.f32 0.0, %v342
        %v344 = vpop.f32.mrb[0].mxu0
        %v345 = vadd.f32 0.0, %v344
        %v346 = vpop.f32.mrb[0].mxu0
        %v347 = vadd.f32 0.0, %v346
        %v348 = vpop.f32.mrb[0].mxu0
        %v349 = vadd.f32 0.0, %v348
        %350 = vdwg.mxu0
        %v351 = vlaneseq
        %v352 = vshrl.u32 %v351, 7
        %v353 = vadd.s32 %v352, 8
        %v354 = vld [vmem:[%s2] sm:$0xf]
        %v355 = vld [vmem:[%s2 + $0x4] sm:$0xf]
        %v356 = vpack.c.bf16 %v337, %v333
        %v357 = vpack.c.bf16 %v339, %v335
        %v358 = vpack.c.bf16 %v347, %v343
        %v359 = vpack.c.bf16 %v349, %v345
        %v362 = vunpack.c.l.b16 %v354
        %v363 = vunpack.c.l.b16 %v355
        %v364 = vpack.c.b16 %v363, %v362
        %vm365 = vcmask 261120
        %v367 = vsel %vm365, %v364, 0
        %369 = vmatprep.subr.bf16.mxu0 %v357
        %370 = vmatpush1.bf16.msra.mxu0 %v356
        %371 = vmatprep.subr.bf16.mxu0 %v359
        %372 = vmatpush1.bf16.msra.mxu0 %v358
        %373 = vmatprep.subr.bf16.mxu0 0
        %374 = vmatpush1.bf16.msra.mxu0 0
        %375 = vmatprep.subr.bf16.mxu0 0
        %376 = vmatpush1.bf16.msra.mxu0 0
        %377 = vmatprep.subr.bf16.mxu0 0
        %378 = vmatpush1.bf16.msra.mxu0 0
        %379 = vmatprep.subr.bf16.mxu0 0
        %380 = vmatpush1.bf16.msra.mxu0 0
        %381 = vmatprep.subr.bf16.mxu0 0
        %382 = vmatpush1.bf16.msra.mxu0 0
        %383 = vmatprep.subr.bf16.mxu0 0
        %384 = vmatpush1.bf16.msra.mxu0 0
        %385 = vmatprep.subr.bf16.mxu0 0
        %386 = vmatpush1.bf16.msra.mxu0 0
        %387 = vmatprep.subr.bf16.mxu0 0
        %388 = vmatpush1.bf16.msra.mxu0 0
        %389 = vmatprep.subr.bf16.mxu0 0
        %390 = vmatpush1.bf16.msra.mxu0 0
        %391 = vmatprep.subr.bf16.mxu0 0
        %392 = vmatpush1.bf16.msra.mxu0 0
        %393 = vmatprep.subr.bf16.mxu0 0
        %394 = vmatpush1.bf16.msra.mxu0 0
        %395 = vmatprep.subr.bf16.mxu0 0
        %396 = vmatpush1.bf16.msra.mxu0 0
        %397 = vmatprep.subr.bf16.mxu0 0
        %398 = vmatpush1.bf16.msra.mxu0 0
        %399 = vmatprep.subr.bf16.mxu0 0
        %400 = vmatpush1.bf16.msra.mxu0 0
        %401 = vmatprep.mubr.bf16.mxu0 0
        %402 = vmatmul.mubr.bf16.gmra.mrb[0].mxu0 %v367
        %v403 = vpop.f32.mrb[0].mxu0
        %v404 = vadd.f32 0.0, %v403
        %v405 = vpop.f32.mrb[0].mxu0
        %v406 = vadd.f32 0.0, %v405
        %v407 = vpop.f32.mrb[0].mxu0
        %v408 = vadd.f32 0.0, %v407
        %v409 = vpop.f32.mrb[0].mxu0
        %v410 = vadd.f32 0.0, %v409
        %411 = vdwg.mxu0
        %v412 = vld [vmem:[%s4] sm:$0xff]
        %v413 = vld [vmem:[%s4 + $0x8] sm:$0xff]
        %v414 = vmul.f32 %v404, 2.0
        %v415 = vmul.f32 %v406, 2.0
        %v416 = vmul.f32 %v408, 2.0
        %v417 = vmul.f32 %v410, 2.0
        %419 = vset.pattern.permute.xlu0 0
        %420 = vperm.xlu0 %419, %v412
        %v421 = vpop.permute.xlu0 %420
        %424 = vset.pattern.permute.xlu0 0
        %425 = vperm.xlu0 %424, %v413
        %v426 = vpop.permute.xlu0 %425
        %v428 = vsub.f32 %v421, %v414
        %v429 = vsub.f32 %v421, %v415
        %v430 = vsub.f32 %v426, %v416
        %v431 = vsub.f32 %v426, %v417
        %v432 = vmin.f32 %v428, %v430
        %v433 = vrot.slane %v432, 4
        %v434 = vmin.f32 %v432, %v433
        %v435 = vrot.slane %v434, 2
        %v436 = vmin.f32 %v434, %v435
        %v437 = vrot.slane %v436, 1
        %v438 = vmin.f32 %v436, %v437
        %v439 = vmin.f32 %v429, %v431
        %v440 = vrot.slane %v439, 4
        %v441 = vmin.f32 %v439, %v440
        %v442 = vrot.slane %v441, 2
        %v443 = vmin.f32 %v441, %v442
        %v444 = vrot.slane %v443, 1
        %v445 = vmin.f32 %v443, %v444
        %vm446 = vcmp.eq.f32.partialorder %v428, %v438
        %vm447 = vcmp.eq.f32.partialorder %v429, %v445
        %vm448 = vcmp.eq.f32.partialorder %v430, %v438
        %vm449 = vcmp.eq.f32.partialorder %v431, %v445
        %v450 = vsel %vm446, %v352, 16
        %v451 = vsel %vm447, %v352, 16
        %v452 = vsel %vm448, %v353, 16
        %v453 = vsel %vm449, %v353, 16
        %vm454 = vcmp.lt.s32.totalorder %v450, %v452
        %v455 = vsel %vm454, %v450, %v452
        %v456 = vrot.slane %v455, 4
        %vm457 = vcmp.lt.s32.totalorder %v455, %v456
        %v458 = vsel %vm457, %v455, %v456
        %v459 = vrot.slane %v458, 2
        %vm460 = vcmp.lt.s32.totalorder %v458, %v459
        %v461 = vsel %vm460, %v458, %v459
        %v462 = vrot.slane %v461, 1
        %vm463 = vcmp.lt.s32.totalorder %v461, %v462
        %v464 = vsel %vm463, %v461, %v462
        %vm465 = vcmp.lt.s32.totalorder %v451, %v453
        %v466 = vsel %vm465, %v451, %v453
        %v467 = vrot.slane %v466, 4
        %vm468 = vcmp.lt.s32.totalorder %v466, %v467
        %v469 = vsel %vm468, %v466, %v467
        %v470 = vrot.slane %v469, 2
        %vm471 = vcmp.lt.s32.totalorder %v469, %v470
        %v472 = vsel %vm471, %v469, %v470
        %v473 = vrot.slane %v472, 1
        %vm474 = vcmp.lt.s32.totalorder %v472, %v473
        %v475 = vsel %vm474, %v472, %v473
        %vm476 = vcmp.eq.s32.totalorder %v352, %v464
        %vm477 = vcmp.eq.s32.totalorder %v352, %v475
        %vm478 = vcmp.eq.s32.totalorder %v353, %v464
        %vm479 = vcmp.eq.s32.totalorder %v353, %v475
        %v480 = vsel %vm476, 1, 0
        %v481 = vsel %vm477, 1, 0
        %v482 = vsel %vm478, 1, 0
        %v483 = vsel %vm479, 1, 0
        %v484 = vcvt.s32.f32 %v480
        %v485 = vcvt.s32.f32 %v481
        %v486 = vcvt.s32.f32 %v482
        %v487 = vcvt.s32.f32 %v483
        %v488 = vpack.c.bf16 %v486, %v484
        %v489 = vpack.c.bf16 %v487, %v485
        %v490 = vld [vmem:[%s3] sm:$0xf]
        %v491 = vld [vmem:[%s3 + $0x4] sm:$0xf]
        %v492 = vld [vmem:[%s3 + $0x8] sm:$0xf]
        %v493 = vld [vmem:[%s3 + $0xc] sm:$0xf]
        %v498 = vunpack.c.l.b16 %v490
        %v499 = vunpack.c.l.b16 %v491
        %v500 = vunpack.c.l.b16 %v492
        %v501 = vunpack.c.l.b16 %v493
        %v502 = vpack.c.b16 %v499, %v498
        %v503 = vpack.c.b16 %v501, %v500
        %v505 = vsel %vm291, %v502, 0
        %v508 = vsel %vm291, %v503, 0
        %510 = vmatprep.subr.bf16.mxu0 %v489
        %511 = vmatpush1.bf16.msra.mxu0 %v488
        %512 = vmatprep.subr.bf16.mxu0 0
        %513 = vmatpush1.bf16.msra.mxu0 0
        %514 = vmatprep.subr.bf16.mxu0 0
        %515 = vmatpush1.bf16.msra.mxu0 0
        %516 = vmatprep.subr.bf16.mxu0 0
        %517 = vmatpush1.bf16.msra.mxu0 0
        %518 = vmatprep.subr.bf16.mxu0 0
        %519 = vmatpush1.bf16.msra.mxu0 0
        %520 = vmatprep.subr.bf16.mxu0 0
        %521 = vmatpush1.bf16.msra.mxu0 0
        %522 = vmatprep.subr.bf16.mxu0 0
        %523 = vmatpush1.bf16.msra.mxu0 0
        %524 = vmatprep.subr.bf16.mxu0 0
        %525 = vmatpush1.bf16.msra.mxu0 0
        %526 = vmatprep.subr.bf16.mxu0 0
        %527 = vmatpush1.bf16.msra.mxu0 0
        %528 = vmatprep.subr.bf16.mxu0 0
        %529 = vmatpush1.bf16.msra.mxu0 0
        %530 = vmatprep.subr.bf16.mxu0 0
        %531 = vmatpush1.bf16.msra.mxu0 0
        %532 = vmatprep.subr.bf16.mxu0 0
        %533 = vmatpush1.bf16.msra.mxu0 0
        %534 = vmatprep.subr.bf16.mxu0 0
        %535 = vmatpush1.bf16.msra.mxu0 0
        %536 = vmatprep.subr.bf16.mxu0 0
        %537 = vmatpush1.bf16.msra.mxu0 0
        %538 = vmatprep.subr.bf16.mxu0 0
        %539 = vmatpush1.bf16.msra.mxu0 0
        %540 = vmatprep.subr.bf16.mxu0 0
        %541 = vmatpush1.bf16.msra.mxu0 0
        %542 = vmatprep.mubr.bf16.mxu0 0
        %543 = vmatmul.mubr.bf16.gmra.mrb[0].mxu0 %v505
        %v544 = vpop.f32.mrb[0].mxu0
        %v545 = vadd.f32 0.0, %v544
        %v546 = vpop.f32.mrb[0].mxu0
        %v547 = vadd.f32 0.0, %v546
        %v548 = vpop.f32.mrb[0].mxu0
        %v549 = vadd.f32 0.0, %v548
        %v550 = vpop.f32.mrb[0].mxu0
        %v551 = vadd.f32 0.0, %v550
        %552 = vmatprep.mubr.bf16.mxu0 0
        %553 = vmatmul.mubr.bf16.gmra.mrb[0].mxu0 %v508
        %v554 = vpop.f32.mrb[0].mxu0
        %v555 = vadd.f32 0.0, %v554
        %v556 = vpop.f32.mrb[0].mxu0
        %v557 = vadd.f32 0.0, %v556
        %v558 = vpop.f32.mrb[0].mxu0
        %v559 = vadd.f32 0.0, %v558
        %v560 = vpop.f32.mrb[0].mxu0
        %v561 = vadd.f32 0.0, %v560
        %562 = vdwg.mxu0
        %v563 = vsub.f32 %v333, %v545
        %v564 = vsub.f32 %v335, %v547
        %v565 = vsub.f32 %v337, %v549
        %v566 = vsub.f32 %v339, %v551
        %v567 = vsub.f32 %v343, %v555
        %v568 = vsub.f32 %v345, %v557
        %v569 = vsub.f32 %v347, %v559
        %v570 = vsub.f32 %v349, %v561
        %s571 = scalar_lea.vmem %s2, 8
        %v572 = vld [vmem:[%s571] sm:$0xf]
        %v573 = vld [vmem:[%s571 + $0x4] sm:$0xf]
        %v574 = vpack.c.bf16 %v565, %v563
        %v575 = vpack.c.bf16 %v566, %v564
        %v576 = vpack.c.bf16 %v569, %v567
        %v577 = vpack.c.bf16 %v570, %v568
        %v580 = vunpack.c.l.b16 %v572
        %v581 = vunpack.c.l.b16 %v573
        %v582 = vpack.c.b16 %v581, %v580
        %v584 = vsel %vm365, %v582, 0
        %586 = vmatprep.subr.bf16.mxu0 %v575
        %587 = vmatpush1.bf16.msra.mxu0 %v574
        %588 = vmatprep.subr.bf16.mxu0 %v577
        %589 = vmatpush1.bf16.msra.mxu0 %v576
        %590 = vmatprep.subr.bf16.mxu0 0
        %591 = vmatpush1.bf16.msra.mxu0 0
        %592 = vmatprep.subr.bf16.mxu0 0
        %593 = vmatpush1.bf16.msra.mxu0 0
        %594 = vmatprep.subr.bf16.mxu0 0
        %595 = vmatpush1.bf16.msra.mxu0 0
        %596 = vmatprep.subr.bf16.mxu0 0
        %597 = vmatpush1.bf16.msra.mxu0 0
        %598 = vmatprep.subr.bf16.mxu0 0
        %599 = vmatpush1.bf16.msra.mxu0 0
        %600 = vmatprep.subr.bf16.mxu0 0
        %601 = vmatpush1.bf16.msra.mxu0 0
        %602 = vmatprep.subr.bf16.mxu0 0
        %603 = vmatpush1.bf16.msra.mxu0 0
        %604 = vmatprep.subr.bf16.mxu0 0
        %605 = vmatpush1.bf16.msra.mxu0 0
        %606 = vmatprep.subr.bf16.mxu0 0
        %607 = vmatpush1.bf16.msra.mxu0 0
        %608 = vmatprep.subr.bf16.mxu0 0
        %609 = vmatpush1.bf16.msra.mxu0 0
        %610 = vmatprep.subr.bf16.mxu0 0
        %611 = vmatpush1.bf16.msra.mxu0 0
        %612 = vmatprep.subr.bf16.mxu0 0
        %613 = vmatpush1.bf16.msra.mxu0 0
        %614 = vmatprep.subr.bf16.mxu0 0
        %615 = vmatpush1.bf16.msra.mxu0 0
        %616 = vmatprep.subr.bf16.mxu0 0
        %617 = vmatpush1.bf16.msra.mxu0 0
        %618 = vmatprep.mubr.bf16.mxu0 0
        %619 = vmatmul.mubr.bf16.gmra.mrb[0].mxu0 %v584
        %v620 = vpop.f32.mrb[0].mxu0
        %v621 = vadd.f32 0.0, %v620
        %v622 = vpop.f32.mrb[0].mxu0
        %v623 = vadd.f32 0.0, %v622
        %v624 = vpop.f32.mrb[0].mxu0
        %v625 = vadd.f32 0.0, %v624
        %v626 = vpop.f32.mrb[0].mxu0
        %v627 = vadd.f32 0.0, %v626
        %628 = vdwg.mxu0
        %s629 = scalar_lea.vmem %s4, 16
        %v630 = vld [vmem:[%s629] sm:$0xff]
        %v631 = vld [vmem:[%s629 + $0x8] sm:$0xff]
        %v632 = vmul.f32 %v621, 2.0
        %v633 = vmul.f32 %v623, 2.0
        %v634 = vmul.f32 %v625, 2.0
        %v635 = vmul.f32 %v627, 2.0
        %637 = vset.pattern.permute.xlu0 0
        %638 = vperm.xlu0 %637, %v630
        %v639 = vpop.permute.xlu0 %638
        %642 = vset.pattern.permute.xlu0 0
        %643 = vperm.xlu0 %642, %v631
        %v644 = vpop.permute.xlu0 %643
        %v646 = vsub.f32 %v639, %v632
        %v647 = vsub.f32 %v639, %v633
        %v648 = vsub.f32 %v644, %v634
        %v649 = vsub.f32 %v644, %v635
        %v650 = vmin.f32 %v646, %v648
        %v651 = vrot.slane %v650, 4
        %v652 = vmin.f32 %v650, %v651
        %v653 = vrot.slane %v652, 2
        %v654 = vmin.f32 %v652, %v653
        %v655 = vrot.slane %v654, 1
        %v656 = vmin.f32 %v654, %v655
        %v657 = vmin.f32 %v647, %v649
        %v658 = vrot.slane %v657, 4
        %v659 = vmin.f32 %v657, %v658
        %v660 = vrot.slane %v659, 2
        %v661 = vmin.f32 %v659, %v660
        %v662 = vrot.slane %v661, 1
        %v663 = vmin.f32 %v661, %v662
        %vm664 = vcmp.eq.f32.partialorder %v646, %v656
        %vm665 = vcmp.eq.f32.partialorder %v647, %v663
        %vm666 = vcmp.eq.f32.partialorder %v648, %v656
        %vm667 = vcmp.eq.f32.partialorder %v649, %v663
        %v668 = vsel %vm664, %v352, 16
        %v669 = vsel %vm665, %v352, 16
        %v670 = vsel %vm666, %v353, 16
        %v671 = vsel %vm667, %v353, 16
        %vm672 = vcmp.lt.s32.totalorder %v668, %v670
        %v673 = vsel %vm672, %v668, %v670
        %v674 = vrot.slane %v673, 4
        %vm675 = vcmp.lt.s32.totalorder %v673, %v674
        %v676 = vsel %vm675, %v673, %v674
        %v677 = vrot.slane %v676, 2
        %vm678 = vcmp.lt.s32.totalorder %v676, %v677
        %v679 = vsel %vm678, %v676, %v677
        %v680 = vrot.slane %v679, 1
        %vm681 = vcmp.lt.s32.totalorder %v679, %v680
        %v682 = vsel %vm681, %v679, %v680
        %vm683 = vcmp.lt.s32.totalorder %v669, %v671
        %v684 = vsel %vm683, %v669, %v671
        %v685 = vrot.slane %v684, 4
        %vm686 = vcmp.lt.s32.totalorder %v684, %v685
        %v687 = vsel %vm686, %v684, %v685
        %v688 = vrot.slane %v687, 2
        %vm689 = vcmp.lt.s32.totalorder %v687, %v688
        %v690 = vsel %vm689, %v687, %v688
        %v691 = vrot.slane %v690, 1
        %vm692 = vcmp.lt.s32.totalorder %v690, %v691
        %v693 = vsel %vm692, %v690, %v691
        %v694 = vadd.s32 %v682, 16
        %v695 = vadd.s32 %v693, 16
        %vm696 = vcmp.eq.s32.totalorder %v352, %v682
        %vm697 = vcmp.eq.s32.totalorder %v352, %v693
        %vm698 = vcmp.eq.s32.totalorder %v353, %v682
        %vm699 = vcmp.eq.s32.totalorder %v353, %v693
        %v700 = vsel %vm696, 1, 0
        %v701 = vsel %vm697, 1, 0
        %v702 = vsel %vm698, 1, 0
        %v703 = vsel %vm699, 1, 0
        %v704 = vcvt.s32.f32 %v700
        %v705 = vcvt.s32.f32 %v701
        %v706 = vcvt.s32.f32 %v702
        %v707 = vcvt.s32.f32 %v703
        %v708 = vpack.c.bf16 %v706, %v704
        %v709 = vpack.c.bf16 %v707, %v705
        %s710 = scalar_lea.vmem %s3, 16
        %v711 = vld [vmem:[%s710] sm:$0xf]
        %v712 = vld [vmem:[%s710 + $0x4] sm:$0xf]
        %v713 = vld [vmem:[%s710 + $0x8] sm:$0xf]
        %v714 = vld [vmem:[%s710 + $0xc] sm:$0xf]
        %v719 = vunpack.c.l.b16 %v711
        %v720 = vunpack.c.l.b16 %v712
        %v721 = vunpack.c.l.b16 %v713
        %v722 = vunpack.c.l.b16 %v714
        %v723 = vpack.c.b16 %v720, %v719
        %v724 = vpack.c.b16 %v722, %v721
        %v726 = vsel %vm291, %v723, 0
        %v729 = vsel %vm291, %v724, 0
        %731 = vmatprep.subr.bf16.mxu0 %v709
        %732 = vmatpush1.bf16.msra.mxu0 %v708
        %733 = vmatprep.subr.bf16.mxu0 0
        %734 = vmatpush1.bf16.msra.mxu0 0
        %735 = vmatprep.subr.bf16.mxu0 0
        %736 = vmatpush1.bf16.msra.mxu0 0
        %737 = vmatprep.subr.bf16.mxu0 0
        %738 = vmatpush1.bf16.msra.mxu0 0
        %739 = vmatprep.subr.bf16.mxu0 0
        %740 = vmatpush1.bf16.msra.mxu0 0
        %741 = vmatprep.subr.bf16.mxu0 0
        %742 = vmatpush1.bf16.msra.mxu0 0
        %743 = vmatprep.subr.bf16.mxu0 0
        %744 = vmatpush1.bf16.msra.mxu0 0
        %745 = vmatprep.subr.bf16.mxu0 0
        %746 = vmatpush1.bf16.msra.mxu0 0
        %747 = vmatprep.subr.bf16.mxu0 0
        %748 = vmatpush1.bf16.msra.mxu0 0
        %749 = vmatprep.subr.bf16.mxu0 0
        %750 = vmatpush1.bf16.msra.mxu0 0
        %751 = vmatprep.subr.bf16.mxu0 0
        %752 = vmatpush1.bf16.msra.mxu0 0
        %753 = vmatprep.subr.bf16.mxu0 0
        %754 = vmatpush1.bf16.msra.mxu0 0
        %755 = vmatprep.subr.bf16.mxu0 0
        %756 = vmatpush1.bf16.msra.mxu0 0
        %757 = vmatprep.subr.bf16.mxu0 0
        %758 = vmatpush1.bf16.msra.mxu0 0
        %759 = vmatprep.subr.bf16.mxu0 0
        %760 = vmatpush1.bf16.msra.mxu0 0
        %761 = vmatprep.subr.bf16.mxu0 0
        %762 = vmatpush1.bf16.msra.mxu0 0
        %763 = vmatprep.mubr.bf16.mxu0 0
        %764 = vmatmul.mubr.bf16.gmra.mrb[0].mxu0 %v726
        %v765 = vpop.f32.mrb[0].mxu0
        %v766 = vadd.f32 0.0, %v765
        %v767 = vpop.f32.mrb[0].mxu0
        %v768 = vadd.f32 0.0, %v767
        %v769 = vpop.f32.mrb[0].mxu0
        %v770 = vadd.f32 0.0, %v769
        %v771 = vpop.f32.mrb[0].mxu0
        %v772 = vadd.f32 0.0, %v771
        %773 = vmatprep.mubr.bf16.mxu0 0
        %774 = vmatmul.mubr.bf16.gmra.mrb[0].mxu0 %v729
        %v775 = vpop.f32.mrb[0].mxu0
        %v776 = vadd.f32 0.0, %v775
        %v777 = vpop.f32.mrb[0].mxu0
        %v778 = vadd.f32 0.0, %v777
        %v779 = vpop.f32.mrb[0].mxu0
        %v780 = vadd.f32 0.0, %v779
        %v781 = vpop.f32.mrb[0].mxu0
        %v782 = vadd.f32 0.0, %v781
        %783 = vdwg.mxu0
        %v784 = vsub.f32 %v563, %v766
        %v785 = vsub.f32 %v564, %v768
        %v786 = vsub.f32 %v565, %v770
        %v787 = vsub.f32 %v566, %v772
        %v788 = vsub.f32 %v567, %v776
        %v789 = vsub.f32 %v568, %v778
        %v790 = vsub.f32 %v569, %v780
        %v791 = vsub.f32 %v570, %v782
        %s792 = scalar_lea.vmem %s2, 16
        %v793 = vld [vmem:[%s792] sm:$0xf]
        %v794 = vld [vmem:[%s792 + $0x4] sm:$0xf]
        %v795 = vpack.c.bf16 %v786, %v784
        %v796 = vpack.c.bf16 %v787, %v785
        %v797 = vpack.c.bf16 %v790, %v788
        %v798 = vpack.c.bf16 %v791, %v789
        %v801 = vunpack.c.l.b16 %v793
        %v802 = vunpack.c.l.b16 %v794
        %v803 = vpack.c.b16 %v802, %v801
        %v805 = vsel %vm365, %v803, 0
        %807 = vmatprep.subr.bf16.mxu0 %v796
        %808 = vmatpush1.bf16.msra.mxu0 %v795
        %809 = vmatprep.subr.bf16.mxu0 %v798
        %810 = vmatpush1.bf16.msra.mxu0 %v797
        %811 = vmatprep.subr.bf16.mxu0 0
        %812 = vmatpush1.bf16.msra.mxu0 0
        %813 = vmatprep.subr.bf16.mxu0 0
        %814 = vmatpush1.bf16.msra.mxu0 0
        %815 = vmatprep.subr.bf16.mxu0 0
        %816 = vmatpush1.bf16.msra.mxu0 0
        %817 = vmatprep.subr.bf16.mxu0 0
        %818 = vmatpush1.bf16.msra.mxu0 0
        %819 = vmatprep.subr.bf16.mxu0 0
        %820 = vmatpush1.bf16.msra.mxu0 0
        %821 = vmatprep.subr.bf16.mxu0 0
        %822 = vmatpush1.bf16.msra.mxu0 0
        %823 = vmatprep.subr.bf16.mxu0 0
        %824 = vmatpush1.bf16.msra.mxu0 0
        %825 = vmatprep.subr.bf16.mxu0 0
        %826 = vmatpush1.bf16.msra.mxu0 0
        %827 = vmatprep.subr.bf16.mxu0 0
        %828 = vmatpush1.bf16.msra.mxu0 0
        %829 = vmatprep.subr.bf16.mxu0 0
        %830 = vmatpush1.bf16.msra.mxu0 0
        %831 = vmatprep.subr.bf16.mxu0 0
        %832 = vmatpush1.bf16.msra.mxu0 0
        %833 = vmatprep.subr.bf16.mxu0 0
        %834 = vmatpush1.bf16.msra.mxu0 0
        %835 = vmatprep.subr.bf16.mxu0 0
        %836 = vmatpush1.bf16.msra.mxu0 0
        %837 = vmatprep.subr.bf16.mxu0 0
        %838 = vmatpush1.bf16.msra.mxu0 0
        %839 = vmatprep.mubr.bf16.mxu0 0
        %840 = vmatmul.mubr.bf16.gmra.mrb[0].mxu0 %v805
        %v841 = vpop.f32.mrb[0].mxu0
        %v842 = vadd.f32 0.0, %v841
        %v843 = vpop.f32.mrb[0].mxu0
        %v844 = vadd.f32 0.0, %v843
        %v845 = vpop.f32.mrb[0].mxu0
        %v846 = vadd.f32 0.0, %v845
        %v847 = vpop.f32.mrb[0].mxu0
        %v848 = vadd.f32 0.0, %v847
        %849 = vdwg.mxu0
        %s850 = scalar_lea.vmem %s4, 32
        %v851 = vld [vmem:[%s850] sm:$0xff]
        %v852 = vld [vmem:[%s850 + $0x8] sm:$0xff]
        %v853 = vmul.f32 %v842, 2.0
        %v854 = vmul.f32 %v844, 2.0
        %v855 = vmul.f32 %v846, 2.0
        %v856 = vmul.f32 %v848, 2.0
        %858 = vset.pattern.permute.xlu0 0
        %859 = vperm.xlu0 %858, %v851
        %v860 = vpop.permute.xlu0 %859
        %863 = vset.pattern.permute.xlu0 0
        %864 = vperm.xlu0 %863, %v852
        %v865 = vpop.permute.xlu0 %864
        %v867 = vsub.f32 %v860, %v853
        %v868 = vsub.f32 %v860, %v854
        %v869 = vsub.f32 %v865, %v855
        %v870 = vsub.f32 %v865, %v856
        %v871 = vmin.f32 %v867, %v869
        %v872 = vrot.slane %v871, 4
        %v873 = vmin.f32 %v871, %v872
        %v874 = vrot.slane %v873, 2
        %v875 = vmin.f32 %v873, %v874
        %v876 = vrot.slane %v875, 1
        %v877 = vmin.f32 %v875, %v876
        %v878 = vmin.f32 %v868, %v870
        %v879 = vrot.slane %v878, 4
        %v880 = vmin.f32 %v878, %v879
        %v881 = vrot.slane %v880, 2
        %v882 = vmin.f32 %v880, %v881
        %v883 = vrot.slane %v882, 1
        %v884 = vmin.f32 %v882, %v883
        %vm885 = vcmp.eq.f32.partialorder %v867, %v877
        %vm886 = vcmp.eq.f32.partialorder %v868, %v884
        %vm887 = vcmp.eq.f32.partialorder %v869, %v877
        %vm888 = vcmp.eq.f32.partialorder %v870, %v884
        %v889 = vsel %vm885, %v352, 16
        %v890 = vsel %vm886, %v352, 16
        %v891 = vsel %vm887, %v353, 16
        %v892 = vsel %vm888, %v353, 16
        %vm893 = vcmp.lt.s32.totalorder %v889, %v891
        %v894 = vsel %vm893, %v889, %v891
        %v895 = vrot.slane %v894, 4
        %vm896 = vcmp.lt.s32.totalorder %v894, %v895
        %v897 = vsel %vm896, %v894, %v895
        %v898 = vrot.slane %v897, 2
        %vm899 = vcmp.lt.s32.totalorder %v897, %v898
        %v900 = vsel %vm899, %v897, %v898
        %v901 = vrot.slane %v900, 1
        %vm902 = vcmp.lt.s32.totalorder %v900, %v901
        %v903 = vsel %vm902, %v900, %v901
        %vm904 = vcmp.lt.s32.totalorder %v890, %v892
        %v905 = vsel %vm904, %v890, %v892
        %v906 = vrot.slane %v905, 4
        %vm907 = vcmp.lt.s32.totalorder %v905, %v906
        %v908 = vsel %vm907, %v905, %v906
        %v909 = vrot.slane %v908, 2
        %vm910 = vcmp.lt.s32.totalorder %v908, %v909
        %v911 = vsel %vm910, %v908, %v909
        %v912 = vrot.slane %v911, 1
        %vm913 = vcmp.lt.s32.totalorder %v911, %v912
        %v914 = vsel %vm913, %v911, %v912
        %vm915 = vcmp.eq.s32.totalorder %v352, %v903
        %vm916 = vcmp.eq.s32.totalorder %v352, %v914
        %vm917 = vcmp.eq.s32.totalorder %v353, %v903
        %vm918 = vcmp.eq.s32.totalorder %v353, %v914
        %v919 = vsel %vm915, 1, 0
        %v920 = vsel %vm916, 1, 0
        %v921 = vsel %vm917, 1, 0
        %v922 = vsel %vm918, 1, 0
        %v923 = vcvt.s32.f32 %v919
        %v924 = vcvt.s32.f32 %v920
        %v925 = vcvt.s32.f32 %v921
        %v926 = vcvt.s32.f32 %v922
        %v927 = vpack.c.bf16 %v925, %v923
        %v928 = vpack.c.bf16 %v926, %v924
        %s929 = scalar_lea.vmem %s3, 32
        %v930 = vld [vmem:[%s929] sm:$0xf]
        %v931 = vld [vmem:[%s929 + $0x4] sm:$0xf]
        %v932 = vld [vmem:[%s929 + $0x8] sm:$0xf]
        %v933 = vld [vmem:[%s929 + $0xc] sm:$0xf]
        %v938 = vunpack.c.l.b16 %v930
        %v939 = vunpack.c.l.b16 %v931
        %v940 = vunpack.c.l.b16 %v932
        %v941 = vunpack.c.l.b16 %v933
        %v942 = vpack.c.b16 %v939, %v938
        %v943 = vpack.c.b16 %v941, %v940
        %v945 = vsel %vm291, %v942, 0
        %v948 = vsel %vm291, %v943, 0
        %950 = vmatprep.subr.bf16.mxu0 %v928
        %951 = vmatpush1.bf16.msra.mxu0 %v927
        %952 = vmatprep.subr.bf16.mxu0 0
        %953 = vmatpush1.bf16.msra.mxu0 0
        %954 = vmatprep.subr.bf16.mxu0 0
        %955 = vmatpush1.bf16.msra.mxu0 0
        %956 = vmatprep.subr.bf16.mxu0 0
        %957 = vmatpush1.bf16.msra.mxu0 0
        %958 = vmatprep.subr.bf16.mxu0 0
        %959 = vmatpush1.bf16.msra.mxu0 0
        %960 = vmatprep.subr.bf16.mxu0 0
        %961 = vmatpush1.bf16.msra.mxu0 0
        %962 = vmatprep.subr.bf16.mxu0 0
        %963 = vmatpush1.bf16.msra.mxu0 0
        %964 = vmatprep.subr.bf16.mxu0 0
        %965 = vmatpush1.bf16.msra.mxu0 0
        %966 = vmatprep.subr.bf16.mxu0 0
        %967 = vmatpush1.bf16.msra.mxu0 0
        %968 = vmatprep.subr.bf16.mxu0 0
        %969 = vmatpush1.bf16.msra.mxu0 0
        %970 = vmatprep.subr.bf16.mxu0 0
        %971 = vmatpush1.bf16.msra.mxu0 0
        %972 = vmatprep.subr.bf16.mxu0 0
        %973 = vmatpush1.bf16.msra.mxu0 0
        %974 = vmatprep.subr.bf16.mxu0 0
        %975 = vmatpush1.bf16.msra.mxu0 0
        %976 = vmatprep.subr.bf16.mxu0 0
        %977 = vmatpush1.bf16.msra.mxu0 0
        %978 = vmatprep.subr.bf16.mxu0 0
        %979 = vmatpush1.bf16.msra.mxu0 0
        %980 = vmatprep.subr.bf16.mxu0 0
        %981 = vmatpush1.bf16.msra.mxu0 0
        %982 = vmatprep.mubr.bf16.mxu0 0
        %983 = vmatmul.mubr.bf16.gmra.mrb[0].mxu0 %v945
        %v984 = vpop.f32.mrb[0].mxu0
        %v985 = vadd.f32 0.0, %v984
        %v986 = vpop.f32.mrb[0].mxu0
        %v987 = vadd.f32 0.0, %v986
        %v988 = vpop.f32.mrb[0].mxu0
        %v989 = vadd.f32 0.0, %v988
        %v990 = vpop.f32.mrb[0].mxu0
        %v991 = vadd.f32 0.0, %v990
        %992 = vmatprep.mubr.bf16.mxu0 0
        %993 = vmatmul.mubr.bf16.gmra.mrb[0].mxu0 %v948
        %v994 = vpop.f32.mrb[0].mxu0
        %v995 = vadd.f32 0.0, %v994
        %v996 = vpop.f32.mrb[0].mxu0
        %v997 = vadd.f32 0.0, %v996
        %v998 = vpop.f32.mrb[0].mxu0
        %v999 = vadd.f32 0.0, %v998
        %v1000 = vpop.f32.mrb[0].mxu0
        %v1001 = vadd.f32 0.0, %v1000
        %1002 = vdwg.mxu0
        %v1003 = vsub.f32 %v784, %v985
        %v1004 = vsub.f32 %v785, %v987
        %v1005 = vsub.f32 %v786, %v989
        %v1006 = vsub.f32 %v787, %v991
        %v1007 = vsub.f32 %v788, %v995
        %v1008 = vsub.f32 %v789, %v997
        %v1009 = vsub.f32 %v790, %v999
        %v1010 = vsub.f32 %v791, %v1001
        %s1011 = scalar_lea.vmem %s2, 24
        %v1012 = vld [vmem:[%s1011] sm:$0xf]
        %v1013 = vld [vmem:[%s1011 + $0x4] sm:$0xf]
        %v1014 = vpack.c.bf16 %v1005, %v1003
        %v1015 = vpack.c.bf16 %v1006, %v1004
        %v1016 = vpack.c.bf16 %v1009, %v1007
        %v1017 = vpack.c.bf16 %v1010, %v1008
        %v1020 = vunpack.c.l.b16 %v1012
        %v1021 = vunpack.c.l.b16 %v1013
        %v1022 = vpack.c.b16 %v1021, %v1020
        %v1024 = vsel %vm365, %v1022, 0
        %1026 = vmatprep.subr.bf16.mxu0 %v1015
        %1027 = vmatpush1.bf16.msra.mxu0 %v1014
        %1028 = vmatprep.subr.bf16.mxu0 %v1017
        %1029 = vmatpush1.bf16.msra.mxu0 %v1016
        %1030 = vmatprep.subr.bf16.mxu0 0
        %1031 = vmatpush1.bf16.msra.mxu0 0
        %1032 = vmatprep.subr.bf16.mxu0 0
        %1033 = vmatpush1.bf16.msra.mxu0 0
        %1034 = vmatprep.subr.bf16.mxu0 0
        %1035 = vmatpush1.bf16.msra.mxu0 0
        %1036 = vmatprep.subr.bf16.mxu0 0
        %1037 = vmatpush1.bf16.msra.mxu0 0
        %1038 = vmatprep.subr.bf16.mxu0 0
        %1039 = vmatpush1.bf16.msra.mxu0 0
        %1040 = vmatprep.subr.bf16.mxu0 0
        %1041 = vmatpush1.bf16.msra.mxu0 0
        %1042 = vmatprep.subr.bf16.mxu0 0
        %1043 = vmatpush1.bf16.msra.mxu0 0
        %1044 = vmatprep.subr.bf16.mxu0 0
        %1045 = vmatpush1.bf16.msra.mxu0 0
        %1046 = vmatprep.subr.bf16.mxu0 0
        %1047 = vmatpush1.bf16.msra.mxu0 0
        %1048 = vmatprep.subr.bf16.mxu0 0
        %1049 = vmatpush1.bf16.msra.mxu0 0
        %1050 = vmatprep.subr.bf16.mxu0 0
        %1051 = vmatpush1.bf16.msra.mxu0 0
        %1052 = vmatprep.subr.bf16.mxu0 0
        %1053 = vmatpush1.bf16.msra.mxu0 0
        %1054 = vmatprep.subr.bf16.mxu0 0
        %1055 = vmatpush1.bf16.msra.mxu0 0
        %1056 = vmatprep.subr.bf16.mxu0 0
        %1057 = vmatpush1.bf16.msra.mxu0 0
        %1058 = vmatprep.mubr.bf16.mxu0 0
        %1059 = vmatmul.mubr.bf16.gmra.mrb[0].mxu0 %v1024
        %v1060 = vpop.f32.mrb[0].mxu0
        %v1061 = vadd.f32 0.0, %v1060
        %v1062 = vpop.f32.mrb[0].mxu0
        %v1063 = vadd.f32 0.0, %v1062
        %v1064 = vpop.f32.mrb[0].mxu0
        %v1065 = vadd.f32 0.0, %v1064
        %v1066 = vpop.f32.mrb[0].mxu0
        %v1067 = vadd.f32 0.0, %v1066
        %1068 = vdwg.mxu0
        %s1069 = scalar_lea.vmem %s4, 48
        %v1070 = vld [vmem:[%s1069] sm:$0xff]
        %v1071 = vld [vmem:[%s1069 + $0x8] sm:$0xff]
        %v1072 = vmul.f32 %v1061, 2.0
        %v1073 = vmul.f32 %v1063, 2.0
        %v1074 = vmul.f32 %v1065, 2.0
        %v1075 = vmul.f32 %v1067, 2.0
        %1077 = vset.pattern.permute.xlu0 0
        %1078 = vperm.xlu0 %1077, %v1070
        %v1079 = vpop.permute.xlu0 %1078
        %1082 = vset.pattern.permute.xlu0 0
        %1083 = vperm.xlu0 %1082, %v1071
        %v1084 = vpop.permute.xlu0 %1083
        %v1086 = vsub.f32 %v1079, %v1072
        %v1087 = vsub.f32 %v1079, %v1073
        %v1088 = vsub.f32 %v1084, %v1074
        %v1089 = vsub.f32 %v1084, %v1075
        %v1090 = vmin.f32 %v1086, %v1088
        %v1091 = vrot.slane %v1090, 4
        %v1092 = vmin.f32 %v1090, %v1091
        %v1093 = vrot.slane %v1092, 2
        %v1094 = vmin.f32 %v1092, %v1093
        %v1095 = vrot.slane %v1094, 1
        %v1096 = vmin.f32 %v1094, %v1095
        %v1097 = vmin.f32 %v1087, %v1089
        %v1098 = vrot.slane %v1097, 4
        %v1099 = vmin.f32 %v1097, %v1098
        %v1100 = vrot.slane %v1099, 2
        %v1101 = vmin.f32 %v1099, %v1100
        %v1102 = vrot.slane %v1101, 1
        %v1103 = vmin.f32 %v1101, %v1102
        %vm1104 = vcmp.eq.f32.partialorder %v1086, %v1096
        %vm1105 = vcmp.eq.f32.partialorder %v1087, %v1103
        %vm1106 = vcmp.eq.f32.partialorder %v1088, %v1096
        %vm1107 = vcmp.eq.f32.partialorder %v1089, %v1103
        %v1108 = vsel %vm1104, %v352, 16
        %v1109 = vsel %vm1105, %v352, 16
        %v1110 = vsel %vm1106, %v353, 16
        %v1111 = vsel %vm1107, %v353, 16
        %vm1112 = vcmp.lt.s32.totalorder %v1108, %v1110
        %v1113 = vsel %vm1112, %v1108, %v1110
        %v1114 = vrot.slane %v1113, 4
        %vm1115 = vcmp.lt.s32.totalorder %v1113, %v1114
        %v1116 = vsel %vm1115, %v1113, %v1114
        %v1117 = vrot.slane %v1116, 2
        %vm1118 = vcmp.lt.s32.totalorder %v1116, %v1117
        %v1119 = vsel %vm1118, %v1116, %v1117
        %v1120 = vrot.slane %v1119, 1
        %vm1121 = vcmp.lt.s32.totalorder %v1119, %v1120
        %v1122 = vsel %vm1121, %v1119, %v1120
        %vm1123 = vcmp.lt.s32.totalorder %v1109, %v1111
        %v1124 = vsel %vm1123, %v1109, %v1111
        %v1125 = vrot.slane %v1124, 4
        %vm1126 = vcmp.lt.s32.totalorder %v1124, %v1125
        %v1127 = vsel %vm1126, %v1124, %v1125
        %v1128 = vrot.slane %v1127, 2
        %vm1129 = vcmp.lt.s32.totalorder %v1127, %v1128
        %v1130 = vsel %vm1129, %v1127, %v1128
        %v1131 = vrot.slane %v1130, 1
        %vm1132 = vcmp.lt.s32.totalorder %v1130, %v1131
        %v1133 = vsel %vm1132, %v1130, %v1131
        %v1134 = vadd.s32 %v1122, 16
        %v1135 = vadd.s32 %v1133, 16
        %vm1136 = vcmask 1040384
        %v1137 = vsel %vm1136, %v464, %v694
        %v1138 = vsel %vm1136, %v475, %v695
        %vm1139 = vcmask 1041408
        %v1140 = vsel %vm1139, %v1137, %v903
        %v1141 = vsel %vm1139, %v1138, %v914
        %vm1142 = vcmask 1042432
        %v1143 = vsel %vm1142, %v1140, %v1134
        %v1144 = vsel %vm1142, %v1141, %v1135
        %v1145 = vcombine.low %v1143, %v1144
        %1146 = vst [vmem:[%s261] sm:$0xff] %v1145
        %s1147 = sand.u32 %s137, 1
        %s1148 = scalar_lea.sflag [#allocation4], %s1147
        %s1149 = sand.u32 %s137, 1
        %s1150 = smul.addr %s1149, 8
        %s1151 = scalar_lea.vmem [#allocation3], %s1150
        // Predicated region
        $region79: #{tpu_custom_call.1} parent=73 // pred_check
          %p1152 = pneg %p147
        $region80: #{tpu_custom_call.1} parent=73 // pred_check_branch
          %1154 = sbr.rel (%p1152) target = $region82
        $region81: #{tpu_custom_call.1} parent=73 // pred_region
          %s1155 = smul.u32 2, %s19
          %s1157 = ssub.s32 128, 128
          %1158 = vsyncadd %s1148, %s1157
          %s1159 = smul.addr %s1155, 64
          %s1160 = scalar_lea.hbm %s5, %s1159
          %s1162 = sshll.u32 %s1151, 4
          %s1163 = int_to_ptr.vmem [resolvable:$true] %s1162
          %1165 = dma.vmem_to_hbm [thread:$0]  %s1163, 128, %s1160, %s1148
        $region82: #{tpu_custom_call.1} parent=73 // pred_fallthru
          _
      $region74: #{tpu_custom_call.1} parent=5 // pred_fallthru
        _
      %p1166 = scmp.le.s32.totalorder 2, %s14
      // Predicated region
      $region83: #{tpu_custom_call.1} parent=5 // pred_check
        %p1167 = pneg %p1166
      $region84: #{tpu_custom_call.1} parent=5 // pred_check_branch
        %1169 = sbr.rel (%p1167) target = $region86
      $region85: #{tpu_custom_call.1} parent=5 // pred_region
        %s1170 = ssub.s32 %s14, 2
        // Predicated region
        $region87: #{tpu_custom_call.1} parent=85 // pred_check
          %p1171 = pneg %p153
        $region88: #{tpu_custom_call.1} parent=85 // pred_check_branch
          %1173 = sbr.rel (%p1171) target = $region90
        $region89: #{tpu_custom_call.1} parent=85 // pred_region
          %s1174 = sand.u32 %s138, 1
          %s1175 = scalar_lea.sflag [#allocation4], %s1174
          %s1176 = sand.u32 %s138, 1
          %s1177 = smul.addr %s1176, 8
          %s1178 = scalar_lea.vmem [#allocation3], %s1177
          %1179 = dma.done %s1175, 128
        $region90: #{tpu_custom_call.1} parent=85 // pred_fallthru
          _
      $region86: #{tpu_custom_call.1} parent=5 // pred_fallthru
        _
    $region6: #{tpu_custom_call.1} parent=1 // loop_footer
      %s18 = sadd.s32 1, %s14
    $region7: #{tpu_custom_call.1} parent=1 // loop_footer_branch
      %13 = sbr.rel target = $region3
    $region8: #{tpu_custom_call.1} parent=1 // loop_exit
      _
    %1180 = vsyncpa [#allocation4], 1
    %s1181 = scalar_lea.sflag [#allocation4], 1
    %1182 = vsyncpa %s1181, 1

</llo_original>
